<compile_context>
chip_gen: v7x
topology: tpu7x:2x2x1
jax: 0.10.0
libtpu: 0.0.40
codegen_flags: <defaults>
</compile_context>

<pallas_src>
import jax
import jax.numpy as jnp
import numpy as np
from jax.experimental import pallas as pl
from jax.experimental.pallas import tpu as pltpu

_BN_EPS = 1e-5
_INV_SQRT2 = 0.7071067811865476

_VMEM_CAP = None


def _vmem_capacity_bytes():
    """Physical VMEM of the local TPU generation (cached); conservative v7x fallback."""
    global _VMEM_CAP
    if _VMEM_CAP is None:
        try:
            _VMEM_CAP = int(pltpu.get_tpu_info().vmem_capacity_bytes)
        except Exception:
            _VMEM_CAP = 64 << 20
    return _VMEM_CAP


def _residual_kernel(x_ref, w1t_ref, bn1_ref, w2t_ref, bn2_ref, o_ref, xbf_ref):
    k = pl.program_id(0)
    nk = pl.num_programs(0)

    # Cast x to bf16 once; the resident bf16 copy halves per-step VMEM->vreg x traffic and
    # removes (nk-1) redundant VPU casts.
    @pl.when(k == 0)
    def _():
        xbf_ref[...] = x_ref[...].astype(jnp.bfloat16)

    # ---- Linear 1, one K-tile of hidden features (bf16 MXU, f32 accumulation) ----
    # Bias b1 omitted: cancelled exactly by the batch-mean subtraction of training-mode BN1.
    h = jnp.dot(xbf_ref[...], w1t_ref[...], preferred_element_type=jnp.float32)   # [N, TK]

    # ---- BatchNorm1d #1 (training-mode batch stats), centered variance, folded scale ----
    mu1 = jnp.mean(h, axis=0, keepdims=True)
    d1 = h - mu1
    var1 = jnp.mean(d1 * d1, axis=0, keepdims=True)
    scale1 = bn1_ref[0:1, :] * jax.lax.rsqrt(var1 + _BN_EPS)        # gamma1 * rsqrt(var+eps)
    h = d1 * scale1 + bn1_ref[1:2, :]                               # + beta1

    # ---- GELU (exact erf form, PyTorch nn.GELU default) ----
    h = 0.5 * h * (1.0 + jax.lax.erf(h * _INV_SQRT2))

    # ---- Linear 2 partial product, accumulated directly into the resident f32 output ----
    p = jnp.dot(h.astype(jnp.bfloat16), w2t_ref[...], preferred_element_type=jnp.float32)

    @pl.when(k == 0)
    def _():
        o_ref[...] = p          # first partial: plain store (no zero-fill pass)

    @pl.when(k != 0)
    def _():
        o_ref[...] += p

    # ---- Last K step: BatchNorm1d #2 (folded, centered variance) + residual add, in place ----
    @pl.when(k == nk - 1)
    def _():
        a = o_ref[...]
        mu2 = jnp.mean(a, axis=0, keepdims=True)
        d2 = a - mu2
        var2 = jnp.mean(d2 * d2, axis=0, keepdims=True)
        scale2 = bn2_ref[0:1, :] * jax.lax.rsqrt(var2 + _BN_EPS)
        o_ref[...] = x_ref[...] + d2 * scale2 + bn2_ref[1:2, :]


def _pick_tk(dim, n, vmem_cap):
    """Largest lane-aligned K tile that divides dim, keeps >=2 grid steps (so the next weight
    tile's DMA overlaps compute) and fits the generation's VMEM together with the resident
    x/out blocks.  Small or non-128-divisible dims fall back to a single step (tk = dim)."""
    resident = (2 * n * dim * 4      # x f32 (assume double-buffered)
                + n * dim * 2        # x bf16 scratch
                + 2 * n * dim * 4    # f32 output / Linear2 accumulator
                + 2 * 2 * dim * 4)   # bn2 params
    budget = int(0.8 * vmem_cap) - resident
    for tk in (1024, 512, 256, 128):
        if dim % tk == 0 and dim // tk >= 2:
            # double-buffered bf16 W1/W2 tiles + bn1 tile
            tile_bytes = 2 * 2 * (dim * tk * 2) + 2 * 2 * tk * 4
            if tile_bytes <= budget:
                return tk
    # TODO(synk): dims whose full weights don't fit VMEM need an output-feature-tiled two-pass
    # BN; not needed for the shapes exercised here.
    return dim


def prepare_params(params, dim, batch_hint=128):
    """One-time host-side prep (do NOT call per forward): transpose + bf16-cast the weights,
    pre-block W1^T into contiguous [nk, dim, tk] K-tiles, pack BN affine params."""
    tk = _pick_tk(dim, batch_hint, _vmem_capacity_bytes())
    nk = dim // tk
    w1t = jnp.asarray(params["w1"]).T.astype(jnp.bfloat16)              # [dim_in, dim_out]
    w1t_blk = w1t.reshape(dim, nk, tk).transpose(1, 0, 2)               # [nk, dim, tk], contiguous tiles
    w2t = jnp.asarray(params["w2"]).T.astype(jnp.bfloat16)              # [dim, dim]; row tiles contiguous
    bn1 = jnp.stack([params["gamma1"], params["beta1"]]).astype(jnp.float32)   # (2, dim)
    bn2 = jnp.stack([params["gamma2"], params["beta2"]]).astype(jnp.float32)   # (2, dim)
    # Linear biases b1/b2 intentionally dropped: training-mode BN cancels them exactly.
    return {"w1t_blk": w1t_blk, "bn1": bn1, "w2t": w2t, "bn2": bn2}


@jax.jit
def residual_layer(x, prepped):
    """x: [N, dim] float32.  prepped: output of prepare_params()."""
    n, dim = x.shape
    nk, _, tk = prepped["w1t_blk"].shape

    # VMEM estimate: resident x (f32 + bf16 scratch) + output, double-buffered weight tiles,
    # BN params, plus slack for compiler temporaries.
    est = (2 * n * dim * 4 + n * dim * 2 + 2 * n * dim * 4
           + 2 * 2 * dim * tk * 2 + 2 * 2 * tk * dim * 2
           + 2 * 2 * tk * 4 + 2 * 2 * dim * 4 + (2 << 20))
    cap = _vmem_capacity_bytes()
    usable = cap - (8 << 20)                       # headroom for Mosaic's own scratch
    vmem_limit = int(min(max(2 * est, 32 << 20), usable))
    vmem_limit = int(max(vmem_limit, min(est, usable)))   # never clamp below the requirement

    return pl.pallas_call(
        _residual_kernel,
        out_shape=jax.ShapeDtypeStruct((n, dim), jnp.float32),
        grid=(nk,),
        in_specs=[
            pl.BlockSpec((n, dim), lambda k: (0, 0)),            # x f32, resident across K
            pl.BlockSpec((None, dim, tk), lambda k: (k, 0, 0)),  # W1^T tile (pre-blocked, contiguous DMA)
            pl.BlockSpec((2, tk), lambda k: (0, k)),             # (gamma1, beta1) tile
            pl.BlockSpec((tk, dim), lambda k: (k, 0)),           # W2^T row tile (contiguous)
            pl.BlockSpec((2, dim), lambda k: (0, 0)),            # (gamma2, beta2), resident
        ],
        out_specs=pl.BlockSpec((n, dim), lambda k: (0, 0)),      # resident; doubles as Linear2 accumulator
        scratch_shapes=[pltpu.VMEM((n, dim), jnp.bfloat16)],     # resident bf16 copy of x
        compiler_params=pltpu.CompilerParams(
            dimension_semantics=("arbitrary",),                  # K is a reduction axis
            vmem_limit_bytes=vmem_limit,
        ),
    )(x, prepped["w1t_blk"], prepped["bn1"], prepped["w2t"], prepped["bn2"])


def init_params(key, dim):
    """Deterministic init mirroring PyTorch defaults:
    Linear: weight/bias ~ U(-1/sqrt(fan_in), 1/sqrt(fan_in)); BN: gamma=1, beta=0."""
    ks = jax.random.split(key, 4)
    bound = 1.0 / np.sqrt(dim)
    return {
        "w1": jax.random.uniform(ks[0], (dim, dim), jnp.float32, -bound, bound),
        "b1": jax.random.uniform(ks[1], (dim,), jnp.float32, -bound, bound),
        "gamma1": jnp.ones((dim,), jnp.float32),
        "beta1": jnp.zeros((dim,), jnp.float32),
        "w2": jax.random.uniform(ks[2], (dim, dim), jnp.float32, -bound, bound),
        "b2": jax.random.uniform(ks[3], (dim,), jnp.float32, -bound, bound),
        "gamma2": jnp.ones((dim,), jnp.float32),
        "beta2": jnp.zeros((dim,), jnp.float32),
    }


def _reference(x, p):
    """Pure-JAX f32 reference matching the PyTorch forward exactly (training-mode BN,
    biases included — they cancel against the batch-mean subtraction)."""
    h = x @ p["w1"].T + p["b1"]
    mu = h.mean(0, keepdims=True)
    var = ((h - mu) ** 2).mean(0, keepdims=True)
    h = (h - mu) / jnp.sqrt(var + _BN_EPS) * p["gamma1"] + p["beta1"]
    h = 0.5 * h * (1.0 + jax.lax.erf(h * _INV_SQRT2))
    h = h @ p["w2"].T + p["b2"]
    mu = h.mean(0, keepdims=True)
    var = ((h - mu) ** 2).mean(0, keepdims=True)
    h = (h - mu) / jnp.sqrt(var + _BN_EPS) * p["gamma2"] + p["beta2"]
    return x + h


if __name__ == "__main__":
    N, DIM = 16, 512   # small shapes; dim lane-dense and big enough to exercise the K grid (nk >= 2)
    key = jax.random.PRNGKey(0)
    kx, kp = jax.random.split(key)
    x = jax.random.normal(kx, (N, DIM), jnp.float32)
    params = init_params(kp, DIM)

    prepped = prepare_params(params, DIM, batch_hint=N)   # one-time weight layout/cast
    out = jax.block_until_ready(residual_layer(x, prepped))

    ref = _reference(x, params)
    # bf16 MXU inputs (with f32 accumulation) introduce ~1e-3-level deviation vs the exact
    # f32 reference; BN re-normalization keeps it well inside this tolerance.
    np.testing.assert_allclose(np.asarray(out), np.asarray(ref), rtol=2e-2, atol=2e-2)
    print("KERNEL_OK")
</pallas_src>

<mosaic_0001>
module attributes {stable_mosaic.version = 11 : i64} {
  func.func @_residual_kernel(%arg0: i32, %arg1: memref<16x512xf32, #tpu.memory_space<vmem>>, %arg2: memref<1x512x256xbf16, #tpu.memory_space<vmem>>, %arg3: memref<2x256xf32, #tpu.memory_space<vmem>>, %arg4: memref<256x512xbf16, #tpu.memory_space<vmem>>, %arg5: memref<2x512xf32, #tpu.memory_space<vmem>>, %arg6: memref<16x512xf32, #tpu.memory_space<vmem>>, %arg7: memref<16x512xbf16, #tpu.memory_space<vmem>>) attributes {dimension_semantics = [#tpu.dimension_semantics<arbitrary>], iteration_bounds = array<i64: 2>, scalar_prefetch = 0 : i64, scratch_operands = 1 : i64, tpu.core_type = #tpu.core_type<tc>, window_params = [{pipeline_mode = #tpu.pipeline_mode<synchronous>, transform_indices = @transform_0, window_bounds = array<i64: 16, 512>}, {transform_indices = @transform_1, window_bounds = array<i64: 1, 512, 256>}, {transform_indices = @transform_2, window_bounds = array<i64: 2, 256>}, {transform_indices = @transform_3, window_bounds = array<i64: 256, 512>}, {pipeline_mode = #tpu.pipeline_mode<synchronous>, transform_indices = @transform_4, window_bounds = array<i64: 2, 512>}, {pipeline_mode = #tpu.pipeline_mode<synchronous>, transform_indices = @transform_5, window_bounds = array<i64: 16, 512>}]} {
    %c0_i32 = arith.constant 0 : i32
    %0 = arith.cmpi eq, %arg0, %c0_i32 : i32
    %1 = arith.extui %0 : i1 to i32
    %c0_i32_0 = arith.constant 0 : i32
    %2 = arith.cmpi ne, %1, %c0_i32_0 : i32
    scf.if %2 {
      %c0_24 = arith.constant 0 : index
      %c0_25 = arith.constant 0 : index
      %48 = vector.load %arg1[%c0_24, %c0_25] : memref<16x512xf32, #tpu.memory_space<vmem>>, vector<16x512xf32>
      %49 = arith.truncf %48 : vector<16x512xf32> to vector<16x512xbf16>
      %c0_26 = arith.constant 0 : index
      %c0_27 = arith.constant 0 : index
      %50 = vector.load %arg7[%c0_26, %c0_27] : memref<16x512xbf16, #tpu.memory_space<vmem>>, vector<16x512xbf16>
      tpu.vector_store %arg7[%c0_26, %c0_27], %49 {strides = array<i32>} : memref<16x512xbf16, #tpu.memory_space<vmem>>, vector<16x512xbf16>,
    } else {
    }
    %c0 = arith.constant 0 : index
    %c0_1 = arith.constant 0 : index
    %3 = vector.load %arg7[%c0, %c0_1] : memref<16x512xbf16, #tpu.memory_space<vmem>>, vector<16x512xbf16>
    %c0_2 = arith.constant 0 : index
    %c0_3 = arith.constant 0 : index
    %c0_4 = arith.constant 0 : index
    %4 = vector.load %arg2[%c0_2, %c0_3, %c0_4] : memref<1x512x256xbf16, #tpu.memory_space<vmem>>, vector<1x512x256xbf16>
    %5 = vector.shape_cast %4 : vector<1x512x256xbf16> to vector<512x256xbf16>
    %cst = arith.constant dense<0.000000e+00> : vector<16x256xf32>
    %6 = tpu.matmul %3, %5, %cst {dimension_numbers = #tpu.dot_dimension_numbers<[1], [0], [0], [1], [0, 0, 1, 1], [], []>} : vector<16x512xbf16>, vector<512x256xbf16>, vector<16x256xf32> -> vector<16x256xf32>
    %cst_5 = arith.constant dense<0.000000e+00> : vector<256xf32>
    %7 = vector.multi_reduction <add>, %6, %cst_5 [0] : vector<16x256xf32> to vector<256xf32>
    %8 = vector.shape_cast %7 : vector<256xf32> to vector<1x256xf32>
    %cst_6 = arith.constant 1.600000e+01 : f32
    %9 = vector.broadcast %cst_6 : f32 to vector<1x256xf32>
    %10 = arith.divf %8, %9 : vector<1x256xf32>
    %11 = vector.broadcast %10 : vector<1x256xf32> to vector<16x256xf32>
    %12 = arith.subf %6, %11 : vector<16x256xf32>
    %13 = arith.mulf %12, %12 : vector<16x256xf32>
    %cst_7 = arith.constant dense<0.000000e+00> : vector<256xf32>
    %14 = vector.multi_reduction <add>, %13, %cst_7 [0] : vector<16x256xf32> to vector<256xf32>
    %15 = vector.shape_cast %14 : vector<256xf32> to vector<1x256xf32>
    %cst_8 = arith.constant 1.600000e+01 : f32
    %16 = vector.broadcast %cst_8 : f32 to vector<1x256xf32>
    %17 = arith.divf %15, %16 : vector<1x256xf32>
    %c0_9 = arith.constant 0 : index
    %c0_10 = arith.constant 0 : index
    %18 = vector.load %arg3[%c0_9, %c0_10] : memref<2x256xf32, #tpu.memory_space<vmem>>, vector<1x256xf32>
    %cst_11 = arith.constant 9.99999974E-6 : f32
    %19 = vector.broadcast %cst_11 : f32 to vector<1x256xf32>
    %20 = arith.addf %17, %19 : vector<1x256xf32>
    %21 = math.rsqrt %20 : vector<1x256xf32>
    %22 = arith.mulf %18, %21 : vector<1x256xf32>
    %23 = vector.broadcast %22 : vector<1x256xf32> to vector<16x256xf32>
    %24 = arith.mulf %12, %23 : vector<16x256xf32>
    %c1 = arith.constant 1 : index
    %c0_12 = arith.constant 0 : index
    %25 = vector.load %arg3[%c1, %c0_12] : memref<2x256xf32, #tpu.memory_space<vmem>>, vector<1x256xf32>
    %26 = vector.broadcast %25 : vector<1x256xf32> to vector<16x256xf32>
    %27 = arith.addf %24, %26 : vector<16x256xf32>
    %cst_13 = arith.constant 5.000000e-01 : f32
    %28 = vector.broadcast %cst_13 : f32 to vector<16x256xf32>
    %29 = arith.mulf %28, %27 : vector<16x256xf32>
    %cst_14 = arith.constant 0.707106769 : f32
    %30 = vector.broadcast %cst_14 : f32 to vector<16x256xf32>
    %31 = arith.mulf %27, %30 : vector<16x256xf32>
    %32 = math.erf %31 : vector<16x256xf32>
    %cst_15 = arith.constant 1.000000e+00 : f32
    %33 = vector.broadcast %cst_15 : f32 to vector<16x256xf32>
    %34 = arith.addf %33, %32 : vector<16x256xf32>
    %35 = arith.mulf %29, %34 : vector<16x256xf32>
    %36 = arith.truncf %35 : vector<16x256xf32> to vector<16x256xbf16>
    %c0_16 = arith.constant 0 : index
    %c0_17 = arith.constant 0 : index
    %37 = vector.load %arg4[%c0_16, %c0_17] : memref<256x512xbf16, #tpu.memory_space<vmem>>, vector<256x512xbf16>
    %cst_18 = arith.constant dense<0.000000e+00> : vector<16x512xf32>
    %38 = tpu.matmul %36, %37, %cst_18 {dimension_numbers = #tpu.dot_dimension_numbers<[1], [0], [0], [1], [0, 0, 1, 1], [], []>} : vector<16x256xbf16>, vector<256x512xbf16>, vector<16x512xf32> -> vector<16x512xf32>
    %c0_i32_19 = arith.constant 0 : i32
    %39 = arith.cmpi eq, %arg0, %c0_i32_19 : i32
    %40 = arith.extui %39 : i1 to i32
    %c0_i32_20 = arith.constant 0 : i32
    %41 = arith.cmpi ne, %40, %c0_i32_20 : i32
    scf.if %41 {
      %c0_24 = arith.constant 0 : index
      %c0_25 = arith.constant 0 : index
      %48 = vector.load %arg6[%c0_24, %c0_25] : memref<16x512xf32, #tpu.memory_space<vmem>>, vector<16x512xf32>
      tpu.vector_store %arg6[%c0_24, %c0_25], %38 {strides = array<i32>} : memref<16x512xf32, #tpu.memory_space<vmem>>, vector<16x512xf32>,
    } else {
    }
    %c0_i32_21 = arith.constant 0 : i32
    %42 = arith.cmpi ne, %arg0, %c0_i32_21 : i32
    %43 = arith.extui %42 : i1 to i32
    %c0_i32_22 = arith.constant 0 : i32
    %44 = arith.cmpi ne, %43, %c0_i32_22 : i32
    scf.if %44 {
      %c0_24 = arith.constant 0 : index
      %c0_25 = arith.constant 0 : index
      %48 = vector.load %arg6[%c0_24, %c0_25] : memref<16x512xf32, #tpu.memory_space<vmem>>, vector<16x512xf32>
      %49 = arith.addf %48, %38 : vector<16x512xf32>
      %c0_26 = arith.constant 0 : index
      %c0_27 = arith.constant 0 : index
      %50 = vector.load %arg6[%c0_26, %c0_27] : memref<16x512xf32, #tpu.memory_space<vmem>>, vector<16x512xf32>
      tpu.vector_store %arg6[%c0_26, %c0_27], %49 {strides = array<i32>} : memref<16x512xf32, #tpu.memory_space<vmem>>, vector<16x512xf32>,
    } else {
    }
    %c1_i32 = arith.constant 1 : i32
    %45 = arith.cmpi eq, %arg0, %c1_i32 : i32
    %46 = arith.extui %45 : i1 to i32
    %c0_i32_23 = arith.constant 0 : i32
    %47 = arith.cmpi ne, %46, %c0_i32_23 : i32
    scf.if %47 {
      %c0_24 = arith.constant 0 : index
      %c0_25 = arith.constant 0 : index
      %48 = vector.load %arg6[%c0_24, %c0_25] : memref<16x512xf32, #tpu.memory_space<vmem>>, vector<16x512xf32>
      %cst_26 = arith.constant dense<0.000000e+00> : vector<512xf32>
      %49 = vector.multi_reduction <add>, %48, %cst_26 [0] : vector<16x512xf32> to vector<512xf32>
      %50 = vector.shape_cast %49 : vector<512xf32> to vector<1x512xf32>
      %cst_27 = arith.constant 1.600000e+01 : f32
      %51 = vector.broadcast %cst_27 : f32 to vector<1x512xf32>
      %52 = arith.divf %50, %51 : vector<1x512xf32>
      %53 = vector.broadcast %52 : vector<1x512xf32> to vector<16x512xf32>
      %54 = arith.subf %48, %53 : vector<16x512xf32>
      %55 = arith.mulf %54, %54 : vector<16x512xf32>
      %cst_28 = arith.constant dense<0.000000e+00> : vector<512xf32>
      %56 = vector.multi_reduction <add>, %55, %cst_28 [0] : vector<16x512xf32> to vector<512xf32>
      %57 = vector.shape_cast %56 : vector<512xf32> to vector<1x512xf32>
      %cst_29 = arith.constant 1.600000e+01 : f32
      %58 = vector.broadcast %cst_29 : f32 to vector<1x512xf32>
      %59 = arith.divf %57, %58 : vector<1x512xf32>
      %c0_30 = arith.constant 0 : index
      %c0_31 = arith.constant 0 : index
      %60 = vector.load %arg5[%c0_30, %c0_31] : memref<2x512xf32, #tpu.memory_space<vmem>>, vector<1x512xf32>
      %cst_32 = arith.constant 9.99999974E-6 : f32
      %61 = vector.broadcast %cst_32 : f32 to vector<1x512xf32>
      %62 = arith.addf %59, %61 : vector<1x512xf32>
      %63 = math.rsqrt %62 : vector<1x512xf32>
      %64 = arith.mulf %60, %63 : vector<1x512xf32>
      %c0_33 = arith.constant 0 : index
      %c0_34 = arith.constant 0 : index
      %65 = vector.load %arg1[%c0_33, %c0_34] : memref<16x512xf32, #tpu.memory_space<vmem>>, vector<16x512xf32>
      %66 = vector.broadcast %64 : vector<1x512xf32> to vector<16x512xf32>
      %67 = arith.mulf %54, %66 : vector<16x512xf32>
      %68 = arith.addf %65, %67 : vector<16x512xf32>
      %c1_35 = arith.constant 1 : index
      %c0_36 = arith.constant 0 : index
      %69 = vector.load %arg5[%c1_35, %c0_36] : memref<2x512xf32, #tpu.memory_space<vmem>>, vector<1x512xf32>
      %70 = vector.broadcast %69 : vector<1x512xf32> to vector<16x512xf32>
      %71 = arith.addf %68, %70 : vector<16x512xf32>
      %c0_37 = arith.constant 0 : index
      %c0_38 = arith.constant 0 : index
      %72 = vector.load %arg6[%c0_37, %c0_38] : memref<16x512xf32, #tpu.memory_space<vmem>>, vector<16x512xf32>
      tpu.vector_store %arg6[%c0_37, %c0_38], %71 {strides = array<i32>} : memref<16x512xf32, #tpu.memory_space<vmem>>, vector<16x512xf32>,
    } else {
    }
    return
  }
  func.func @transform_0(%arg0: i32) -> (i32, i32) {
    %c0_i32 = arith.constant 0 : i32
    %c0_i32_0 = arith.constant 0 : i32
    %c0_i32_1 = arith.constant 0 : i32
    return %c0_i32, %c0_i32_0 : i32, i32
  }
  func.func @transform_1(%arg0: i32) -> (i32, i32, i32) {
    %c0_i32 = arith.constant 0 : i32
    %c0_i32_0 = arith.constant 0 : i32
    %c0_i32_1 = arith.constant 0 : i32
    return %arg0, %c0_i32, %c0_i32_0 : i32, i32, i32
  }
  func.func @transform_2(%arg0: i32) -> (i32, i32) {
    %c0_i32 = arith.constant 0 : i32
    %c0_i32_0 = arith.constant 0 : i32
    return %c0_i32, %arg0 : i32, i32
  }
  func.func @transform_3(%arg0: i32) -> (i32, i32) {
    %c0_i32 = arith.constant 0 : i32
    %c0_i32_0 = arith.constant 0 : i32
    return %arg0, %c0_i32 : i32, i32
  }
  func.func @transform_4(%arg0: i32) -> (i32, i32) {
    %c0_i32 = arith.constant 0 : i32
    %c0_i32_0 = arith.constant 0 : i32
    %c0_i32_1 = arith.constant 0 : i32
    return %c0_i32, %c0_i32_0 : i32, i32
  }
  func.func @transform_5(%arg0: i32) -> (i32, i32) {
    %c0_i32 = arith.constant 0 : i32
    %c0_i32_0 = arith.constant 0 : i32
    %c0_i32_1 = arith.constant 0 : i32
    return %c0_i32, %c0_i32_0 : i32, i32
  }
}

</mosaic_0001>

<llo_original>
// kernel: residual_layer.1
$region0: #{residual_layer.1}
  #allocation0 [shape = 'u32[]', space=smem, size = 0x4, offset = 0x4, fixed_abs, tag = 'smem constant byte address 0x4 - core index']
  #allocation1 [shape = 'u32[144,128]{1,0:T(1,128)}', space=vmem, size = 0x12000, scoped, tag = 'internal scratch']
  #allocation2 [shape = 'bf16[16,512]{1,0:T(16,128)(2,1)}', space=vmem, size = 0x4000, scoped, tag = 'scratch operand']
  %s0 = inlined_call_operand.hbm [shape: f32[16,512], index: 0, kind: input, shape index: {}]
  %s1 = inlined_call_operand.hbm [shape: bf16[2,512,256], index: 1, kind: input, shape index: {}]
  %s2 = inlined_call_operand.hbm [shape: f32[2,512], index: 2, kind: input, shape index: {}]
  %s3 = inlined_call_operand.hbm [shape: bf16[512,512], index: 3, kind: input, shape index: {}]
  %s4 = inlined_call_operand.hbm [shape: f32[2,512], index: 4, kind: input, shape index: {}]
  %s5 = inlined_call_operand.hbm [shape: f32[16,512], index: 5, kind: output, shape index: {}]
  %s6 = sld [smem:[#allocation0]]
  $region89: #{residual_layer.1} parent=0
    _
  %s8 = ssub.s32 1, %s6
  %s9 = scalar_select 0, %s8, %s6
  $region1: #{residual_layer.1} parent=0
    #allocation3 [shape = 'u8[32768]{0}', space=vmem, size = 0x8000, scoped, tag = 'input window, operand 0, single buffered']
    #allocation4 [shape = 's32[2]{0}', space=sflag, size = 0x8, scoped, tag = 'scoped memory for residual_layer.1']
    #allocation5 [shape = 's32[2]{0}', space=sflag, size = 0x8, scoped, tag = 'scoped memory for residual_layer.1']
    #allocation6 [shape = 'u8[524288]{0}', space=vmem, size = 0x80000, scoped, tag = 'input window, operand 1']
    #allocation7 [shape = 's32[2]{0}', space=sflag, size = 0x8, scoped, tag = 'scoped memory for residual_layer.1']
    #allocation8 [shape = 'u8[4096]{0}', space=vmem, size = 0x1000, scoped, tag = 'input window, operand 2']
    #allocation9 [shape = 'u8[524288]{0}', space=vmem, size = 0x80000, scoped, tag = 'input window, operand 3']
    #allocation10 [shape = 's32[2]{0}', space=sflag, size = 0x8, scoped, tag = 'scoped memory for residual_layer.1']
    #allocation11 [shape = 'u8[4096]{0}', space=vmem, size = 0x1000, scoped, tag = 'input window, operand 4, single buffered']
    #allocation12 [shape = 'u8[32768]{0}', space=vmem, size = 0x8000, scoped, tag = 'output window, operand 0, single buffered']
    %10 = vsyncpa [#allocation4], 0
    %11 = vsyncpa [#allocation7], 0
    %s12 = scalar_lea.sflag [#allocation7], 1
    %13 = vsyncpa %s12, 0
    %14 = vsyncpa [#allocation10], 0
    %s15 = scalar_lea.sflag [#allocation10], 1
    %16 = vsyncpa %s15, 0
    %17 = vsyncpa [#allocation5], 0
    loop: start=0, step=1, limit=4
    $region2: #{residual_layer.1} parent=1 // loop_pre_header
      _
    $region3: #{residual_layer.1} parent=1 // loop_header
      %s19 = sphi 0, %s23
      %p20 = scmp.ge.s32.totalorder %s19, 4
      %s27 = sphi 0, %s27
      %s29 = sphi 0, %s27
      %s30 = sphi 0, %s29
      %s44 = sphi 0, %s30
      %s50 = sphi 0, %s52
      %s53 = sphi 0, %s50
      %s54 = sphi 0, %s53
      %s70 = sphi 0, %s54
      %s76 = sphi 0, %s78
      %s79 = sphi 0, %s76
      %s80 = sphi 0, %s79
      %s96 = sphi 0, %s80
      %s102 = sphi 0, %s104
      %s105 = sphi 0, %s102
      %s106 = sphi 0, %s105
      %s122 = sphi 0, %s106
      %s126 = sphi 0, %s126
      %s128 = sphi 0, %s126
      %s129 = sphi 0, %s128
      %s143 = sphi 0, %s129
      %s147 = sphi 0, %s147
      %s149 = sphi 0, %s147
      %s150 = sphi 0, %s149
      %s164 = sphi 0, %s150
    $region4: #{residual_layer.1} parent=1 // loop_header_branch
      %22 = sbr.rel (%p20) target = $region8
    $region5: #{residual_layer.1} parent=1 // loop_body
      %s24 = ssub.s32 %s19, 1
      %s25 = ssub.s32 %s19, 2
      %s26 = sadd.s32 %s19, 1
      %s28 = sadd.s32 %s27, 1
      %p31 = scmp.eq.s32.totalorder %s19, 1
      %p32 = scmp.ne.s32.totalorder %s27, %s29
      %p33 = scmp.eq.s32.totalorder %s19, 0
      %p34 = por %p32, %p33
      %p35 = scmp.ne.s32.totalorder %s27, %s29
      %p36 = scmp.eq.s32.totalorder %s24, 1
      %p37 = por %p35, %p36
      %p38 = scmp.ne.s32.totalorder %s29, %s30
      %p39 = scmp.eq.s32.totalorder %s24, 0
      %p40 = por %p38, %p39
      %p41 = scmp.ne.s32.totalorder %s29, %s30
      %p42 = scmp.eq.s32.totalorder %s25, 1
      %p43 = por %p41, %p42
      %p45 = scmp.ne.s32.totalorder %s30, %s44
      %p46 = scmp.eq.s32.totalorder %s25, 0
      %p47 = por %p45, %p46
      %s48 = ssub.s32 %s19, %s26
      %p49 = scmp.eq.s32.totalorder %s48, 0
      %s51 = sadd.s32 %s50, 1
      %s52 = scalar_select %p49, %s50, %s51
      %p55 = pneg %p49
      %p56 = scmp.eq.s32.totalorder %s19, 1
      %p57 = por %p55, %p56
      %p58 = scmp.ne.s32.totalorder %s50, %s53
      %p59 = scmp.eq.s32.totalorder %s19, 0
      %p60 = por %p58, %p59
      %p61 = scmp.ne.s32.totalorder %s50, %s53
      %p62 = scmp.eq.s32.totalorder %s24, 1
      %p63 = por %p61, %p62
      %p64 = scmp.ne.s32.totalorder %s53, %s54
      %p65 = scmp.eq.s32.totalorder %s24, 0
      %p66 = por %p64, %p65
      %p67 = scmp.ne.s32.totalorder %s53, %s54
      %p68 = scmp.eq.s32.totalorder %s25, 1
      %p69 = por %p67, %p68
      %p71 = scmp.ne.s32.totalorder %s54, %s70
      %p72 = scmp.eq.s32.totalorder %s25, 0
      %p73 = por %p71, %p72
      %s74 = ssub.s32 %s19, %s26
      %p75 = scmp.eq.s32.totalorder %s74, 0
      %s77 = sadd.s32 %s76, 1
      %s78 = scalar_select %p75, %s76, %s77
      %p81 = pneg %p75
      %p82 = scmp.eq.s32.totalorder %s19, 1
      %p83 = por %p81, %p82
      %p84 = scmp.ne.s32.totalorder %s76, %s79
      %p85 = scmp.eq.s32.totalorder %s19, 0
      %p86 = por %p84, %p85
      %p87 = scmp.ne.s32.totalorder %s76, %s79
      %p88 = scmp.eq.s32.totalorder %s24, 1
      %p89 = por %p87, %p88
      %p90 = scmp.ne.s32.totalorder %s79, %s80
      %p91 = scmp.eq.s32.totalorder %s24, 0
      %p92 = por %p90, %p91
      %p93 = scmp.ne.s32.totalorder %s79, %s80
      %p94 = scmp.eq.s32.totalorder %s25, 1
      %p95 = por %p93, %p94
      %p97 = scmp.ne.s32.totalorder %s80, %s96
      %p98 = scmp.eq.s32.totalorder %s25, 0
      %p99 = por %p97, %p98
      %s100 = ssub.s32 %s19, %s26
      %p101 = scmp.eq.s32.totalorder %s100, 0
      %s103 = sadd.s32 %s102, 1
      %s104 = scalar_select %p101, %s102, %s103
      %p107 = pneg %p101
      %p108 = scmp.eq.s32.totalorder %s19, 1
      %p109 = por %p107, %p108
      %p110 = scmp.ne.s32.totalorder %s102, %s105
      %p111 = scmp.eq.s32.totalorder %s19, 0
      %p112 = por %p110, %p111
      %p113 = scmp.ne.s32.totalorder %s102, %s105
      %p114 = scmp.eq.s32.totalorder %s24, 1
      %p115 = por %p113, %p114
      %p116 = scmp.ne.s32.totalorder %s105, %s106
      %p117 = scmp.eq.s32.totalorder %s24, 0
      %p118 = por %p116, %p117
      %p119 = scmp.ne.s32.totalorder %s105, %s106
      %p120 = scmp.eq.s32.totalorder %s25, 1
      %p121 = por %p119, %p120
      %p123 = scmp.ne.s32.totalorder %s106, %s122
      %p124 = scmp.eq.s32.totalorder %s25, 0
      %p125 = por %p123, %p124
      %s127 = sadd.s32 %s126, 1
      %p130 = scmp.eq.s32.totalorder %s19, 1
      %p131 = scmp.ne.s32.totalorder %s126, %s128
      %p132 = scmp.eq.s32.totalorder %s19, 0
      %p133 = por %p131, %p132
      %p134 = scmp.ne.s32.totalorder %s126, %s128
      %p135 = scmp.eq.s32.totalorder %s24, 1
      %p136 = por %p134, %p135
      %p137 = scmp.ne.s32.totalorder %s128, %s129
      %p138 = scmp.eq.s32.totalorder %s24, 0
      %p139 = por %p137, %p138
      %p140 = scmp.ne.s32.totalorder %s128, %s129
      %p141 = scmp.eq.s32.totalorder %s25, 1
      %p142 = por %p140, %p141
      %p144 = scmp.ne.s32.totalorder %s129, %s143
      %p145 = scmp.eq.s32.totalorder %s25, 0
      %p146 = por %p144, %p145
      %s148 = sadd.s32 %s147, 1
      %p151 = scmp.eq.s32.totalorder %s19, 1
      %p152 = scmp.ne.s32.totalorder %s147, %s149
      %p153 = scmp.eq.s32.totalorder %s19, 0
      %p154 = por %p152, %p153
      %p155 = scmp.ne.s32.totalorder %s147, %s149
      %p156 = scmp.eq.s32.totalorder %s24, 1
      %p157 = por %p155, %p156
      %p158 = scmp.ne.s32.totalorder %s149, %s150
      %p159 = scmp.eq.s32.totalorder %s24, 0
      %p160 = por %p158, %p159
      %p161 = scmp.ne.s32.totalorder %s149, %s150
      %p162 = scmp.eq.s32.totalorder %s25, 1
      %p163 = por %p161, %p162
      %p165 = scmp.ne.s32.totalorder %s150, %s164
      %p166 = scmp.eq.s32.totalorder %s25, 0
      %p167 = por %p165, %p166
      %p168 = scmp.le.s32.totalorder 1, %s19
      %p169 = scmp.lt.s32.totalorder %s19, 3
      %p170 = pnand %p168, %p169
      %p171 = pneg %p170
      // Predicated region
      $region9: #{residual_layer.1} parent=5 // pred_check
        _
      $region10: #{residual_layer.1} parent=5 // pred_check_branch
        %173 = sbr.rel (%p170) target = $region12
      $region11: #{residual_layer.1} parent=5 // pred_region
        %s174 = ssub.s32 %s19, 1
        // Predicated region
        $region13: #{residual_layer.1} parent=11 // pred_check
          %p175 = pneg %p40
        $region14: #{residual_layer.1} parent=11 // pred_check_branch
          %177 = sbr.rel (%p175) target = $region16
        $region15: #{residual_layer.1} parent=11 // pred_region
          %s179 = ssub.s32 1024, 1024
          %180 = vsyncadd [#allocation4], %s179
          %s181 = sshll.u32 [#allocation3], 4
          %s182 = int_to_ptr.vmem [resolvable:$true] %s181
          %187 = dma.hbm_to_vmem [thread:$0]  %s0, 1024, %s182, [#allocation4], 512, 512, 32
        $region16: #{residual_layer.1} parent=11 // pred_fallthru
          _
        // Predicated region
        $region17: #{residual_layer.1} parent=11 // pred_check
          %p188 = pneg %p139
        $region18: #{residual_layer.1} parent=11 // pred_check_branch
          %190 = sbr.rel (%p188) target = $region20
        $region19: #{residual_layer.1} parent=11 // pred_region
          %s192 = ssub.s32 128, 128
          %193 = vsyncadd [#allocation10], %s192
          %s195 = sshll.u32 [#allocation11], 4
          %s196 = int_to_ptr.vmem [resolvable:$true] %s195
          %198 = dma.hbm_to_vmem [thread:$0]  %s4, 128, %s196, [#allocation10]
        $region20: #{residual_layer.1} parent=11 // pred_fallthru
          _
      $region12: #{residual_layer.1} parent=5 // pred_fallthru
        _
      %p199 = scmp.lt.s32.totalorder %s19, 2
      // Predicated region
      $region21: #{residual_layer.1} parent=5 // pred_check
        %p200 = pneg %p199
      $region22: #{residual_layer.1} parent=5 // pred_check_branch
        %202 = sbr.rel (%p200) target = $region24
      $region23: #{residual_layer.1} parent=5 // pred_region
        // Predicated region
        $region25: #{residual_layer.1} parent=23 // pred_check
          %p203 = pneg %p60
        $region26: #{residual_layer.1} parent=23 // pred_check_branch
          %205 = sbr.rel (%p203) target = $region28
        $region27: #{residual_layer.1} parent=23 // pred_region
          %s206 = sand.u32 %s19, 1
          %s207 = scalar_lea.sflag [#allocation7], %s206
          %s208 = sand.u32 %s50, 1
          %s209 = smul.addr %s208, 512
          %s210 = scalar_lea.vmem [#allocation6], %s209
          %s212 = ssub.s32 8192, 8192
          %213 = vsyncadd %s207, %s212
          %s214 = smul.addr %s19, 128
          %s215 = smul.addr %s214, 64
          %s216 = scalar_lea.hbm %s1, %s215
          %s217 = sshll.u32 %s210, 4
          %s218 = int_to_ptr.vmem [resolvable:$true] %s217
          %223 = dma.hbm_to_vmem [thread:$0]  %s216, 8192, %s218, %s207, 128, 128, 8
        $region28: #{residual_layer.1} parent=23 // pred_fallthru
          _
        // Predicated region
        $region29: #{residual_layer.1} parent=23 // pred_check
          %p224 = pneg %p86
        $region30: #{residual_layer.1} parent=23 // pred_check_branch
          %226 = sbr.rel (%p224) target = $region32
        $region31: #{residual_layer.1} parent=23 // pred_region
          %s227 = sand.u32 %s19, 1
          %s228 = scalar_lea.sflag [#allocation7], %s227
          %s229 = sand.u32 %s76, 1
          %s230 = smul.addr %s229, 4
          %s231 = scalar_lea.vmem [#allocation8], %s230
          %s232 = smul.u32 2, %s19
          %s234 = ssub.s32 64, 64
          %235 = vsyncadd %s228, %s234
          %s236 = smul.addr %s232, 32
          %s237 = scalar_lea.hbm %s2, %s236
          %s239 = sshll.u32 %s231, 4
          %s240 = int_to_ptr.vmem [resolvable:$true] %s239
          %242 = dma.hbm_to_vmem [thread:$0]  %s237, 64, %s240, %s228
        $region32: #{residual_layer.1} parent=23 // pred_fallthru
          _
        // Predicated region
        $region33: #{residual_layer.1} parent=23 // pred_check
          %p243 = pneg %p112
        $region34: #{residual_layer.1} parent=23 // pred_check_branch
          %245 = sbr.rel (%p243) target = $region36
        $region35: #{residual_layer.1} parent=23 // pred_region
          %s246 = sand.u32 %s19, 1
          %s247 = scalar_lea.sflag [#allocation10], %s246
          %s248 = sand.u32 %s102, 1
          %s249 = smul.addr %s248, 512
          %s250 = scalar_lea.vmem [#allocation9], %s249
          %s251 = smul.u32 32, %s19
          %s253 = ssub.s32 8192, 8192
          %254 = vsyncadd %s247, %s253
          %s255 = smul.addr %s251, 4
          %s256 = smul.addr %s255, 64
          %s257 = scalar_lea.hbm %s3, %s256
          %s258 = sshll.u32 %s250, 4
          %s259 = int_to_ptr.vmem [resolvable:$true] %s258
          %264 = dma.hbm_to_vmem [thread:$0]  %s257, 8192, %s259, %s247, 256, 256, 16
        $region36: #{residual_layer.1} parent=23 // pred_fallthru
          _
      $region24: #{residual_layer.1} parent=5 // pred_fallthru
        _
      %p265 = scmp.le.s32.totalorder 1, %s19
      %p266 = scmp.lt.s32.totalorder %s19, 3
      %p267 = pnand %p265, %p266
      %p268 = pneg %p267
      // Predicated region
      $region37: #{residual_layer.1} parent=5 // pred_check
        _
      $region38: #{residual_layer.1} parent=5 // pred_check_branch
        %270 = sbr.rel (%p267) target = $region40
      $region39: #{residual_layer.1} parent=5 // pred_region
        %s271 = ssub.s32 %s19, 1
        // Predicated region
        $region41: #{residual_layer.1} parent=39 // pred_check
          %p272 = pneg %p40
        $region42: #{residual_layer.1} parent=39 // pred_check_branch
          %274 = sbr.rel (%p272) target = $region44
        $region43: #{residual_layer.1} parent=39 // pred_region
          %275 = dma.done [#allocation4], 1024
        $region44: #{residual_layer.1} parent=39 // pred_fallthru
          _
        %s276 = sand.u32 %s24, 1
        %s277 = scalar_lea.sflag [#allocation7], %s276
        %s278 = sand.u32 %s53, 1
        %s279 = smul.addr %s278, 512
        %s280 = scalar_lea.vmem [#allocation6], %s279
        // Predicated region
        $region45: #{residual_layer.1} parent=39 // pred_check
          %p281 = pneg %p66
        $region46: #{residual_layer.1} parent=39 // pred_check_branch
          %283 = sbr.rel (%p281) target = $region48
        $region47: #{residual_layer.1} parent=39 // pred_region
          %284 = dma.done %s277, 8192
        $region48: #{residual_layer.1} parent=39 // pred_fallthru
          _
        %s285 = sand.u32 %s24, 1
        %s286 = scalar_lea.sflag [#allocation7], %s285
        %s287 = sand.u32 %s79, 1
        %s288 = smul.addr %s287, 4
        %s289 = scalar_lea.vmem [#allocation8], %s288
        // Predicated region
        $region49: #{residual_layer.1} parent=39 // pred_check
          %p290 = pneg %p92
        $region50: #{residual_layer.1} parent=39 // pred_check_branch
          %292 = sbr.rel (%p290) target = $region52
        $region51: #{residual_layer.1} parent=39 // pred_region
          %293 = dma.done %s286, 64
        $region52: #{residual_layer.1} parent=39 // pred_fallthru
          _
        %s294 = sand.u32 %s24, 1
        %s295 = scalar_lea.sflag [#allocation10], %s294
        %s296 = sand.u32 %s105, 1
        %s297 = smul.addr %s296, 512
        %s298 = scalar_lea.vmem [#allocation9], %s297
        // Predicated region
        $region53: #{residual_layer.1} parent=39 // pred_check
          %p299 = pneg %p118
        $region54: #{residual_layer.1} parent=39 // pred_check_branch
          %301 = sbr.rel (%p299) target = $region56
        $region55: #{residual_layer.1} parent=39 // pred_region
          %302 = dma.done %s295, 8192
        $region56: #{residual_layer.1} parent=39 // pred_fallthru
          _
        // Predicated region
        $region57: #{residual_layer.1} parent=39 // pred_check
          %p303 = pneg %p139
        $region58: #{residual_layer.1} parent=39 // pred_check_branch
          %305 = sbr.rel (%p303) target = $region60
        $region59: #{residual_layer.1} parent=39 // pred_region
          %306 = dma.done [#allocation10], 128
        $region60: #{residual_layer.1} parent=39 // pred_fallthru
          _
        %p307 = pneg %p40
        %p308 = pneg %p37
        %s309 = sand.u32 %s24, 1
        %s310 = scalar_lea.sflag [#allocation7], %s309
        %s311 = sand.u32 %s53, 1
        %s312 = smul.addr %s311, 512
        %s313 = scalar_lea.vmem [#allocation6], %s312
        %p314 = pneg %p66
        %p315 = pneg %p63
        %s316 = sand.u32 %s24, 1
        %s317 = scalar_lea.sflag [#allocation7], %s316
        %s318 = sand.u32 %s79, 1
        %s319 = smul.addr %s318, 4
        %s320 = scalar_lea.vmem [#allocation8], %s319
        %p321 = pneg %p92
        %p322 = pneg %p89
        %s323 = sand.u32 %s24, 1
        %s324 = scalar_lea.sflag [#allocation10], %s323
        %s325 = sand.u32 %s105, 1
        %s326 = smul.addr %s325, 512
        %s327 = scalar_lea.vmem [#allocation9], %s326
        %p328 = pneg %p118
        %p329 = pneg %p115
        %p330 = pneg %p139
        %p331 = pneg %p136
        %p332 = pneg %p160
        %p333 = pneg %p157
        %s334 = smul.u32 2, %s24
        %s335 = smul.u32 32, %s24
        %p336 = scmp.eq.s32.totalorder %s24, 0
        // Predicated region
        $region61: #{residual_layer.1} parent=39 // pred_check
          %p337 = pneg %p336
        $region62: #{residual_layer.1} parent=39 // pred_check_branch
          %339 = sbr.rel (%p337) target = $region64
        $region63: #{residual_layer.1} parent=39 // pred_region
          %v340 = vld [vmem:[#allocation3] sm:$0xff]
          %v341 = vld [vmem:[#allocation3 + $0x8] sm:$0xff]
          %v342 = vld [vmem:[#allocation3 + $0x10] sm:$0xff]
          %v343 = vld [vmem:[#allocation3 + $0x18] sm:$0xff]
          %v344 = vld [vmem:[#allocation3 + $0x20] sm:$0xff]
          %v345 = vld [vmem:[#allocation3 + $0x28] sm:$0xff]
          %v346 = vld [vmem:[#allocation3 + $0x30] sm:$0xff]
          %v347 = vld [vmem:[#allocation3 + $0x38] sm:$0xff]
          %v348 = vpack.c.bf16 %v344, %v340
          %v349 = vpack.c.bf16 %v345, %v341
          %v350 = vpack.c.bf16 %v346, %v342
          %v351 = vpack.c.bf16 %v347, %v343
          %352 = vst [vmem:[#allocation2] sm:$0xff] %v348
          %353 = vst [vmem:[#allocation2 + $0x8] sm:$0xff] %v349
          %354 = vst [vmem:[#allocation2 + $0x10] sm:$0xff] %v350
          %355 = vst [vmem:[#allocation2 + $0x18] sm:$0xff] %v351
        $region64: #{residual_layer.1} parent=39 // pred_fallthru
          _
        %v356 = vld [vmem:[#allocation2] sm:$0xff]
        %v357 = vld [vmem:[#allocation2 + $0x8] sm:$0xff]
        %v358 = vld [vmem:[#allocation2 + $0x10] sm:$0xff]
        %v359 = vld [vmem:[#allocation2 + $0x18] sm:$0xff]
        %v360 = vld [vmem:[%s280] sm:$0xff]
        %v361 = vld [vmem:[%s280 + $0x8] sm:$0xff]
        %v362 = vld [vmem:[%s280 + $0x10] sm:$0xff]
        %v363 = vld [vmem:[%s280 + $0x18] sm:$0xff]
        %v364 = vld [vmem:[%s280 + $0x20] sm:$0xff]
        %v365 = vld [vmem:[%s280 + $0x28] sm:$0xff]
        %v366 = vld [vmem:[%s280 + $0x30] sm:$0xff]
        %v367 = vld [vmem:[%s280 + $0x38] sm:$0xff]
        %v368 = vld [vmem:[%s280 + $0x40] sm:$0xff]
        %v369 = vld [vmem:[%s280 + $0x48] sm:$0xff]
        %v370 = vld [vmem:[%s280 + $0x50] sm:$0xff]
        %v371 = vld [vmem:[%s280 + $0x58] sm:$0xff]
        %v372 = vld [vmem:[%s280 + $0x60] sm:$0xff]
        %v373 = vld [vmem:[%s280 + $0x68] sm:$0xff]
        %v374 = vld [vmem:[%s280 + $0x70] sm:$0xff]
        %v375 = vld [vmem:[%s280 + $0x78] sm:$0xff]
        %v376 = vld [vmem:[%s280 + $0x80] sm:$0xff]
        %v377 = vld [vmem:[%s280 + $0x88] sm:$0xff]
        %v378 = vld [vmem:[%s280 + $0x90] sm:$0xff]
        %v379 = vld [vmem:[%s280 + $0x98] sm:$0xff]
        %v380 = vld [vmem:[%s280 + $0xa0] sm:$0xff]
        %v381 = vld [vmem:[%s280 + $0xa8] sm:$0xff]
        %v382 = vld [vmem:[%s280 + $0xb0] sm:$0xff]
        %v383 = vld [vmem:[%s280 + $0xb8] sm:$0xff]
        %v384 = vld [vmem:[%s280 + $0xc0] sm:$0xff]
        %v385 = vld [vmem:[%s280 + $0xc8] sm:$0xff]
        %v386 = vld [vmem:[%s280 + $0xd0] sm:$0xff]
        %v387 = vld [vmem:[%s280 + $0xd8] sm:$0xff]
        %v388 = vld [vmem:[%s280 + $0xe0] sm:$0xff]
        %v389 = vld [vmem:[%s280 + $0xe8] sm:$0xff]
        %v390 = vld [vmem:[%s280 + $0xf0] sm:$0xff]
        %v391 = vld [vmem:[%s280 + $0xf8] sm:$0xff]
        %v392 = vld [vmem:[%s280 + $0x100] sm:$0xff]
        %v393 = vld [vmem:[%s280 + $0x108] sm:$0xff]
        %v394 = vld [vmem:[%s280 + $0x110] sm:$0xff]
        %v395 = vld [vmem:[%s280 + $0x118] sm:$0xff]
        %v396 = vld [vmem:[%s280 + $0x120] sm:$0xff]
        %v397 = vld [vmem:[%s280 + $0x128] sm:$0xff]
        %v398 = vld [vmem:[%s280 + $0x130] sm:$0xff]
        %v399 = vld [vmem:[%s280 + $0x138] sm:$0xff]
        %v400 = vld [vmem:[%s280 + $0x140] sm:$0xff]
        %v401 = vld [vmem:[%s280 + $0x148] sm:$0xff]
        %v402 = vld [vmem:[%s280 + $0x150] sm:$0xff]
        %v403 = vld [vmem:[%s280 + $0x158] sm:$0xff]
        %v404 = vld [vmem:[%s280 + $0x160] sm:$0xff]
        %v405 = vld [vmem:[%s280 + $0x168] sm:$0xff]
        %v406 = vld [vmem:[%s280 + $0x170] sm:$0xff]
        %v407 = vld [vmem:[%s280 + $0x178] sm:$0xff]
        %v408 = vld [vmem:[%s280 + $0x180] sm:$0xff]
        %v409 = vld [vmem:[%s280 + $0x188] sm:$0xff]
        %v410 = vld [vmem:[%s280 + $0x190] sm:$0xff]
        %v411 = vld [vmem:[%s280 + $0x198] sm:$0xff]
        %v412 = vld [vmem:[%s280 + $0x1a0] sm:$0xff]
        %v413 = vld [vmem:[%s280 + $0x1a8] sm:$0xff]
        %v414 = vld [vmem:[%s280 + $0x1b0] sm:$0xff]
        %v415 = vld [vmem:[%s280 + $0x1b8] sm:$0xff]
        %v416 = vld [vmem:[%s280 + $0x1c0] sm:$0xff]
        %v417 = vld [vmem:[%s280 + $0x1c8] sm:$0xff]
        %v418 = vld [vmem:[%s280 + $0x1d0] sm:$0xff]
        %v419 = vld [vmem:[%s280 + $0x1d8] sm:$0xff]
        %v420 = vld [vmem:[%s280 + $0x1e0] sm:$0xff]
        %v421 = vld [vmem:[%s280 + $0x1e8] sm:$0xff]
        %v422 = vld [vmem:[%s280 + $0x1f0] sm:$0xff]
        %v423 = vld [vmem:[%s280 + $0x1f8] sm:$0xff]
        %v488 = vunpack.c.l.b16 %v360
        %v489 = vunpack.c.h.b16 %v360
        %v490 = vunpack.c.l.b16 %v361
        %v491 = vunpack.c.h.b16 %v361
        %v492 = vunpack.c.l.b16 %v362
        %v493 = vunpack.c.h.b16 %v362
        %v494 = vunpack.c.l.b16 %v363
        %v495 = vunpack.c.h.b16 %v363
        %v496 = vunpack.c.l.b16 %v364
        %v497 = vunpack.c.h.b16 %v364
        %v498 = vunpack.c.l.b16 %v365
        %v499 = vunpack.c.h.b16 %v365
        %v500 = vunpack.c.l.b16 %v366
        %v501 = vunpack.c.h.b16 %v366
        %v502 = vunpack.c.l.b16 %v367
        %v503 = vunpack.c.h.b16 %v367
        %v504 = vunpack.c.l.b16 %v368
        %v505 = vunpack.c.h.b16 %v368
        %v506 = vunpack.c.l.b16 %v369
        %v507 = vunpack.c.h.b16 %v369
        %v508 = vunpack.c.l.b16 %v370
        %v509 = vunpack.c.h.b16 %v370
        %v510 = vunpack.c.l.b16 %v371
        %v511 = vunpack.c.h.b16 %v371
        %v512 = vunpack.c.l.b16 %v372
        %v513 = vunpack.c.h.b16 %v372
        %v514 = vunpack.c.l.b16 %v373
        %v515 = vunpack.c.h.b16 %v373
        %v516 = vunpack.c.l.b16 %v374
        %v517 = vunpack.c.h.b16 %v374
        %v518 = vunpack.c.l.b16 %v375
        %v519 = vunpack.c.h.b16 %v375
        %v520 = vunpack.c.l.b16 %v376
        %v521 = vunpack.c.h.b16 %v376
        %v522 = vunpack.c.l.b16 %v377
        %v523 = vunpack.c.h.b16 %v377
        %v524 = vunpack.c.l.b16 %v378
        %v525 = vunpack.c.h.b16 %v378
        %v526 = vunpack.c.l.b16 %v379
        %v527 = vunpack.c.h.b16 %v379
        %v528 = vunpack.c.l.b16 %v380
        %v529 = vunpack.c.h.b16 %v380
        %v530 = vunpack.c.l.b16 %v381
        %v531 = vunpack.c.h.b16 %v381
        %v532 = vunpack.c.l.b16 %v382
        %v533 = vunpack.c.h.b16 %v382
        %v534 = vunpack.c.l.b16 %v383
        %v535 = vunpack.c.h.b16 %v383
        %v536 = vunpack.c.l.b16 %v384
        %v537 = vunpack.c.h.b16 %v384
        %v538 = vunpack.c.l.b16 %v385
        %v539 = vunpack.c.h.b16 %v385
        %v540 = vunpack.c.l.b16 %v386
        %v541 = vunpack.c.h.b16 %v386
        %v542 = vunpack.c.l.b16 %v387
        %v543 = vunpack.c.h.b16 %v387
        %v544 = vunpack.c.l.b16 %v388
        %v545 = vunpack.c.h.b16 %v388
        %v546 = vunpack.c.l.b16 %v389
        %v547 = vunpack.c.h.b16 %v389
        %v548 = vunpack.c.l.b16 %v390
        %v549 = vunpack.c.h.b16 %v390
        %v550 = vunpack.c.l.b16 %v391
        %v551 = vunpack.c.h.b16 %v391
        %v552 = vunpack.c.l.b16 %v392
        %v553 = vunpack.c.h.b16 %v392
        %v554 = vunpack.c.l.b16 %v393
        %v555 = vunpack.c.h.b16 %v393
        %v556 = vunpack.c.l.b16 %v394
        %v557 = vunpack.c.h.b16 %v394
        %v558 = vunpack.c.l.b16 %v395
        %v559 = vunpack.c.h.b16 %v395
        %v560 = vunpack.c.l.b16 %v396
        %v561 = vunpack.c.h.b16 %v396
        %v562 = vunpack.c.l.b16 %v397
        %v563 = vunpack.c.h.b16 %v397
        %v564 = vunpack.c.l.b16 %v398
        %v565 = vunpack.c.h.b16 %v398
        %v566 = vunpack.c.l.b16 %v399
        %v567 = vunpack.c.h.b16 %v399
        %v568 = vunpack.c.l.b16 %v400
        %v569 = vunpack.c.h.b16 %v400
        %v570 = vunpack.c.l.b16 %v401
        %v571 = vunpack.c.h.b16 %v401
        %v572 = vunpack.c.l.b16 %v402
        %v573 = vunpack.c.h.b16 %v402
        %v574 = vunpack.c.l.b16 %v403
        %v575 = vunpack.c.h.b16 %v403
        %v576 = vunpack.c.l.b16 %v404
        %v577 = vunpack.c.h.b16 %v404
        %v578 = vunpack.c.l.b16 %v405
        %v579 = vunpack.c.h.b16 %v405
        %v580 = vunpack.c.l.b16 %v406
        %v581 = vunpack.c.h.b16 %v406
        %v582 = vunpack.c.l.b16 %v407
        %v583 = vunpack.c.h.b16 %v407
        %v584 = vunpack.c.l.b16 %v408
        %v585 = vunpack.c.h.b16 %v408
        %v586 = vunpack.c.l.b16 %v409
        %v587 = vunpack.c.h.b16 %v409
        %v588 = vunpack.c.l.b16 %v410
        %v589 = vunpack.c.h.b16 %v410
        %v590 = vunpack.c.l.b16 %v411
        %v591 = vunpack.c.h.b16 %v411
        %v592 = vunpack.c.l.b16 %v412
        %v593 = vunpack.c.h.b16 %v412
        %v594 = vunpack.c.l.b16 %v413
        %v595 = vunpack.c.h.b16 %v413
        %v596 = vunpack.c.l.b16 %v414
        %v597 = vunpack.c.h.b16 %v414
        %v598 = vunpack.c.l.b16 %v415
        %v599 = vunpack.c.h.b16 %v415
        %v600 = vunpack.c.l.b16 %v416
        %v601 = vunpack.c.h.b16 %v416
        %v602 = vunpack.c.l.b16 %v417
        %v603 = vunpack.c.h.b16 %v417
        %v604 = vunpack.c.l.b16 %v418
        %v605 = vunpack.c.h.b16 %v418
        %v606 = vunpack.c.l.b16 %v419
        %v607 = vunpack.c.h.b16 %v419
        %v608 = vunpack.c.l.b16 %v420
        %v609 = vunpack.c.h.b16 %v420
        %v610 = vunpack.c.l.b16 %v421
        %v611 = vunpack.c.h.b16 %v421
        %v612 = vunpack.c.l.b16 %v422
        %v613 = vunpack.c.h.b16 %v422
        %v614 = vunpack.c.l.b16 %v423
        %v615 = vunpack.c.h.b16 %v423
        %v616 = vpack.c.b16 %v490, %v488
        %v617 = vpack.c.b16 %v491, %v489
        %v618 = vpack.c.b16 %v494, %v492
        %v619 = vpack.c.b16 %v495, %v493
        %v620 = vpack.c.b16 %v498, %v496
        %v621 = vpack.c.b16 %v499, %v497
        %v622 = vpack.c.b16 %v502, %v500
        %v623 = vpack.c.b16 %v503, %v501
        %v624 = vpack.c.b16 %v506, %v504
        %v625 = vpack.c.b16 %v507, %v505
        %v626 = vpack.c.b16 %v510, %v508
        %v627 = vpack.c.b16 %v511, %v509
        %v628 = vpack.c.b16 %v514, %v512
        %v629 = vpack.c.b16 %v515, %v513
        %v630 = vpack.c.b16 %v518, %v516
        %v631 = vpack.c.b16 %v519, %v517
        %v632 = vpack.c.b16 %v522, %v520
        %v633 = vpack.c.b16 %v523, %v521
        %v634 = vpack.c.b16 %v526, %v524
        %v635 = vpack.c.b16 %v527, %v525
        %v636 = vpack.c.b16 %v530, %v528
        %v637 = vpack.c.b16 %v531, %v529
        %v638 = vpack.c.b16 %v534, %v532
        %v639 = vpack.c.b16 %v535, %v533
        %v640 = vpack.c.b16 %v538, %v536
        %v641 = vpack.c.b16 %v539, %v537
        %v642 = vpack.c.b16 %v542, %v540
        %v643 = vpack.c.b16 %v543, %v541
        %v644 = vpack.c.b16 %v546, %v544
        %v645 = vpack.c.b16 %v547, %v545
        %v646 = vpack.c.b16 %v550, %v548
        %v647 = vpack.c.b16 %v551, %v549
        %v648 = vpack.c.b16 %v554, %v552
        %v649 = vpack.c.b16 %v555, %v553
        %v650 = vpack.c.b16 %v558, %v556
        %v651 = vpack.c.b16 %v559, %v557
        %v652 = vpack.c.b16 %v562, %v560
        %v653 = vpack.c.b16 %v563, %v561
        %v654 = vpack.c.b16 %v566, %v564
        %v655 = vpack.c.b16 %v567, %v565
        %v656 = vpack.c.b16 %v570, %v568
        %v657 = vpack.c.b16 %v571, %v569
        %v658 = vpack.c.b16 %v574, %v572
        %v659 = vpack.c.b16 %v575, %v573
        %v660 = vpack.c.b16 %v578, %v576
        %v661 = vpack.c.b16 %v579, %v577
        %v662 = vpack.c.b16 %v582, %v580
        %v663 = vpack.c.b16 %v583, %v581
        %v664 = vpack.c.b16 %v586, %v584
        %v665 = vpack.c.b16 %v587, %v585
        %v666 = vpack.c.b16 %v590, %v588
        %v667 = vpack.c.b16 %v591, %v589
        %v668 = vpack.c.b16 %v594, %v592
        %v669 = vpack.c.b16 %v595, %v593
        %v670 = vpack.c.b16 %v598, %v596
        %v671 = vpack.c.b16 %v599, %v597
        %v672 = vpack.c.b16 %v602, %v600
        %v673 = vpack.c.b16 %v603, %v601
        %v674 = vpack.c.b16 %v606, %v604
        %v675 = vpack.c.b16 %v607, %v605
        %v676 = vpack.c.b16 %v610, %v608
        %v677 = vpack.c.b16 %v611, %v609
        %v678 = vpack.c.b16 %v614, %v612
        %v679 = vpack.c.b16 %v615, %v613
        %744 = vmatprep.subr.bf16.mxu0 %v617
        %745 = vmatpush1.bf16.msra.mxu0 %v616
        %746 = vmatprep.subr.bf16.mxu0 %v619
        %747 = vmatpush1.bf16.msra.mxu0 %v618
        %748 = vmatprep.subr.bf16.mxu0 %v621
        %749 = vmatpush1.bf16.msra.mxu0 %v620
        %750 = vmatprep.subr.bf16.mxu0 %v623
        %751 = vmatpush1.bf16.msra.mxu0 %v622
        %752 = vmatprep.subr.bf16.mxu0 %v625
        %753 = vmatpush1.bf16.msra.mxu0 %v624
        %754 = vmatprep.subr.bf16.mxu0 %v627
        %755 = vmatpush1.bf16.msra.mxu0 %v626
        %756 = vmatprep.subr.bf16.mxu0 %v629
        %757 = vmatpush1.bf16.msra.mxu0 %v628
        %758 = vmatprep.subr.bf16.mxu0 %v631
        %759 = vmatpush1.bf16.msra.mxu0 %v630
        %760 = vmatprep.subr.bf16.mxu0 %v633
        %761 = vmatpush1.bf16.msra.mxu0 %v632
        %762 = vmatprep.subr.bf16.mxu0 %v635
        %763 = vmatpush1.bf16.msra.mxu0 %v634
        %764 = vmatprep.subr.bf16.mxu0 %v637
        %765 = vmatpush1.bf16.msra.mxu0 %v636
        %766 = vmatprep.subr.bf16.mxu0 %v639
        %767 = vmatpush1.bf16.msra.mxu0 %v638
        %768 = vmatprep.subr.bf16.mxu0 %v641
        %769 = vmatpush1.bf16.msra.mxu0 %v640
        %770 = vmatprep.subr.bf16.mxu0 %v643
        %771 = vmatpush1.bf16.msra.mxu0 %v642
        %772 = vmatprep.subr.bf16.mxu0 %v645
        %773 = vmatpush1.bf16.msra.mxu0 %v644
        %774 = vmatprep.subr.bf16.mxu0 %v647
        %775 = vmatpush1.bf16.msra.mxu0 %v646
        %776 = vmatprep.mubr.bf16.mxu0 %v357
        %777 = vmatmul.mubr.bf16.gmra.mrb[0].mxu0 %v356
        %v778 = vpop.f32.mrb[0].mxu0
        %v779 = vadd.f32 0.0, %v778
        %v780 = vpop.f32.mrb[0].mxu0
        %v781 = vadd.f32 0.0, %v780
        %v782 = vpop.f32.mrb[0].mxu0
        %v783 = vadd.f32 0.0, %v782
        %v784 = vpop.f32.mrb[0].mxu0
        %v785 = vadd.f32 0.0, %v784
        %786 = vdwg.mxu0
        %787 = vmatprep.subr.bf16.mxu0 %v649
        %788 = vmatpush1.bf16.msra.mxu0 %v648
        %789 = vmatprep.subr.bf16.mxu0 %v651
        %790 = vmatpush1.bf16.msra.mxu0 %v650
        %791 = vmatprep.subr.bf16.mxu0 %v653
        %792 = vmatpush1.bf16.msra.mxu0 %v652
        %793 = vmatprep.subr.bf16.mxu0 %v655
        %794 = vmatpush1.bf16.msra.mxu0 %v654
        %795 = vmatprep.subr.bf16.mxu0 %v657
        %796 = vmatpush1.bf16.msra.mxu0 %v656
        %797 = vmatprep.subr.bf16.mxu0 %v659
        %798 = vmatpush1.bf16.msra.mxu0 %v658
        %799 = vmatprep.subr.bf16.mxu0 %v661
        %800 = vmatpush1.bf16.msra.mxu0 %v660
        %801 = vmatprep.subr.bf16.mxu0 %v663
        %802 = vmatpush1.bf16.msra.mxu0 %v662
        %803 = vmatprep.subr.bf16.mxu0 %v665
        %804 = vmatpush1.bf16.msra.mxu0 %v664
        %805 = vmatprep.subr.bf16.mxu0 %v667
        %806 = vmatpush1.bf16.msra.mxu0 %v666
        %807 = vmatprep.subr.bf16.mxu0 %v669
        %808 = vmatpush1.bf16.msra.mxu0 %v668
        %809 = vmatprep.subr.bf16.mxu0 %v671
        %810 = vmatpush1.bf16.msra.mxu0 %v670
        %811 = vmatprep.subr.bf16.mxu0 %v673
        %812 = vmatpush1.bf16.msra.mxu0 %v672
        %813 = vmatprep.subr.bf16.mxu0 %v675
        %814 = vmatpush1.bf16.msra.mxu0 %v674
        %815 = vmatprep.subr.bf16.mxu0 %v677
        %816 = vmatpush1.bf16.msra.mxu0 %v676
        %817 = vmatprep.subr.bf16.mxu0 %v679
        %818 = vmatpush1.bf16.msra.mxu0 %v678
        %819 = vmatprep.mubr.bf16.mxu0 %v359
        %820 = vmatmul.mubr.bf16.gmra.mrb[0].mxu0 %v358
        %v821 = vpop.f32.mrb[0].mxu0
        %v822 = vadd.f32 %v779, %v821
        %v823 = vpop.f32.mrb[0].mxu0
        %v824 = vadd.f32 %v781, %v823
        %v825 = vpop.f32.mrb[0].mxu0
        %v826 = vadd.f32 %v783, %v825
        %v827 = vpop.f32.mrb[0].mxu0
        %v828 = vadd.f32 %v785, %v827
        %829 = vdwg.mxu0
        %v830 = vadd.f32 %v822, %v826
        %v831 = vrot.slane %v830, 4
        %v832 = vadd.f32 %v830, %v831
        %v833 = vrot.slane %v832, 2
        %v834 = vadd.f32 %v832, %v833
        %v835 = vrot.slane %v834, 1
        %v836 = vadd.f32 %v834, %v835
        %v837 = vadd.f32 %v824, %v828
        %v838 = vrot.slane %v837, 4
        %v839 = vadd.f32 %v837, %v838
        %v840 = vrot.slane %v839, 2
        %v841 = vadd.f32 %v839, %v840
        %v842 = vrot.slane %v841, 1
        %v843 = vadd.f32 %v841, %v842
        %v844 = vrcp.pop 16.0
        %v845 = vmul.f32 %v836, %v844
        %v846 = vmul.f32 %v843, %v844
        %v847 = vsub.f32 %v822, %v845
        %v848 = vsub.f32 %v824, %v846
        %v849 = vsub.f32 %v826, %v845
        %v850 = vsub.f32 %v828, %v846
        %v851 = vmul.f32 %v847, %v847
        %v852 = vmul.f32 %v848, %v848
        %v853 = vmul.f32 %v849, %v849
        %v854 = vmul.f32 %v850, %v850
        %v855 = vadd.f32 %v851, %v853
        %v856 = vrot.slane %v855, 4
        %v857 = vadd.f32 %v855, %v856
        %v858 = vrot.slane %v857, 2
        %v859 = vadd.f32 %v857, %v858
        %v860 = vrot.slane %v859, 1
        %v861 = vadd.f32 %v859, %v860
        %v862 = vadd.f32 %v852, %v854
        %v863 = vrot.slane %v862, 4
        %v864 = vadd.f32 %v862, %v863
        %v865 = vrot.slane %v864, 2
        %v866 = vadd.f32 %v864, %v865
        %v867 = vrot.slane %v866, 1
        %v868 = vadd.f32 %v866, %v867
        %v869 = vmul.f32 %v861, %v844
        %v870 = vmul.f32 %v868, %v844
        %v871 = vld [vmem:[%s289] ss:$2 sm:$0x3]
        %v872 = vadd.f32 %v869, 1e-05
        %v873 = vadd.f32 %v870, 1e-05
        %v874 = vrsqrt.pop %v872
        %v875 = vrsqrt.pop %v873
        %v878 = vcombine.low %v874, %v875
        %v880 = vunpack.c.l.s4 1966171168
        %v881 = vunpack.c.0.s8 %v880
        %v882 = vlaneseq
        %v883 = vshrl.u32 %v882, 7
        %v884 = vsub.s32 %v881, %v883
        %v885 = vrot.slane %v878, %v884
        %v887 = vunpack.c.l.s4 1966171168
        %v888 = vunpack.c.0.s8 %v887
        %v889 = vlaneseq
        %v890 = vshrl.u32 %v889, 7
        %v891 = vsub.s32 %v888, %v890
        %v892 = vrot.slane %v885, %v891
        %v894 = vmul.f32 %v871, %v892
        %v896 = vlaneseq
        %v897 = vshrl.u32 %v896, 7
        %v898 = vsub.s32 0, %v897
        %v899 = vrot.slane %v894, %v898
        %v900 = vlaneseq
        %v901 = vshrl.u32 %v900, 7
        %v902 = vsub.s32 1, %v901
        %v903 = vrot.slane %v894, %v902
        %v906 = vmul.f32 %v847, %v899
        %v907 = vmul.f32 %v848, %v903
        %v908 = vmul.f32 %v849, %v899
        %v909 = vmul.f32 %v850, %v903
        %s910 = scalar_lea.vmem %s289, 1 [#allocation8]
        %v911 = vld [vmem:[%s910] ss:$2 sm:$0x3]
        %v913 = vlaneseq
        %v914 = vshrl.u32 %v913, 7
        %v915 = vsub.s32 0, %v914
        %v916 = vrot.slane %v911, %v915
        %v917 = vlaneseq
        %v918 = vshrl.u32 %v917, 7
        %v919 = vsub.s32 1, %v918
        %v920 = vrot.slane %v911, %v919
        %v923 = vadd.f32 %v906, %v916
        %v924 = vadd.f32 %v907, %v920
        %v925 = vadd.f32 %v908, %v916
        %v926 = vadd.f32 %v909, %v920
        %v927 = vmul.f32 %v923, 0.5
        %v928 = vmul.f32 %v924, 0.5
        %v929 = vmul.f32 %v925, 0.5
        %v930 = vmul.f32 %v926, 0.5
        %v931 = vmul.f32 %v923, 0.70710677
        %v932 = vmul.f32 %v924, 0.70710677
        %v933 = vmul.f32 %v925, 0.70710677
        %v934 = vmul.f32 %v926, 0.70710677
        %v935 = verf.f32.pop %v931
        %v936 = verf.f32.pop %v932
        %v937 = verf.f32.pop %v933
        %v938 = verf.f32.pop %v934
        %v939 = vadd.f32 %v935, 1.0
        %v940 = vadd.f32 %v936, 1.0
        %v941 = vadd.f32 %v937, 1.0
        %v942 = vadd.f32 %v938, 1.0
        %v943 = vmul.f32 %v927, %v939
        %v944 = vmul.f32 %v928, %v940
        %v945 = vmul.f32 %v929, %v941
        %v946 = vmul.f32 %v930, %v942
        %v947 = vpack.c.bf16 %v945, %v943
        %v948 = vpack.c.bf16 %v946, %v944
        %v949 = vld [vmem:[%s298] sm:$0xff]
        %v950 = vld [vmem:[%s298 + $0x8] sm:$0xff]
        %v951 = vld [vmem:[%s298 + $0x10] sm:$0xff]
        %v952 = vld [vmem:[%s298 + $0x18] sm:$0xff]
        %v953 = vld [vmem:[%s298 + $0x20] sm:$0xff]
        %v954 = vld [vmem:[%s298 + $0x28] sm:$0xff]
        %v955 = vld [vmem:[%s298 + $0x30] sm:$0xff]
        %v956 = vld [vmem:[%s298 + $0x38] sm:$0xff]
        %v957 = vld [vmem:[%s298 + $0x40] sm:$0xff]
        %v958 = vld [vmem:[%s298 + $0x48] sm:$0xff]
        %v959 = vld [vmem:[%s298 + $0x50] sm:$0xff]
        %v960 = vld [vmem:[%s298 + $0x58] sm:$0xff]
        %v961 = vld [vmem:[%s298 + $0x60] sm:$0xff]
        %v962 = vld [vmem:[%s298 + $0x68] sm:$0xff]
        %v963 = vld [vmem:[%s298 + $0x70] sm:$0xff]
        %v964 = vld [vmem:[%s298 + $0x78] sm:$0xff]
        %v965 = vld [vmem:[%s298 + $0x80] sm:$0xff]
        %v966 = vld [vmem:[%s298 + $0x88] sm:$0xff]
        %v967 = vld [vmem:[%s298 + $0x90] sm:$0xff]
        %v968 = vld [vmem:[%s298 + $0x98] sm:$0xff]
        %v969 = vld [vmem:[%s298 + $0xa0] sm:$0xff]
        %v970 = vld [vmem:[%s298 + $0xa8] sm:$0xff]
        %v971 = vld [vmem:[%s298 + $0xb0] sm:$0xff]
        %v972 = vld [vmem:[%s298 + $0xb8] sm:$0xff]
        %v973 = vld [vmem:[%s298 + $0xc0] sm:$0xff]
        %v974 = vld [vmem:[%s298 + $0xc8] sm:$0xff]
        %v975 = vld [vmem:[%s298 + $0xd0] sm:$0xff]
        %v976 = vld [vmem:[%s298 + $0xd8] sm:$0xff]
        %v977 = vld [vmem:[%s298 + $0xe0] sm:$0xff]
        %v978 = vld [vmem:[%s298 + $0xe8] sm:$0xff]
        %v979 = vld [vmem:[%s298 + $0xf0] sm:$0xff]
        %v980 = vld [vmem:[%s298 + $0xf8] sm:$0xff]
        %v981 = vld [vmem:[%s298 + $0x100] sm:$0xff]
        %v982 = vld [vmem:[%s298 + $0x108] sm:$0xff]
        %v983 = vld [vmem:[%s298 + $0x110] sm:$0xff]
        %v984 = vld [vmem:[%s298 + $0x118] sm:$0xff]
        %v985 = vld [vmem:[%s298 + $0x120] sm:$0xff]
        %v986 = vld [vmem:[%s298 + $0x128] sm:$0xff]
        %v987 = vld [vmem:[%s298 + $0x130] sm:$0xff]
        %v988 = vld [vmem:[%s298 + $0x138] sm:$0xff]
        %v989 = vld [vmem:[%s298 + $0x140] sm:$0xff]
        %v990 = vld [vmem:[%s298 + $0x148] sm:$0xff]
        %v991 = vld [vmem:[%s298 + $0x150] sm:$0xff]
        %v992 = vld [vmem:[%s298 + $0x158] sm:$0xff]
        %v993 = vld [vmem:[%s298 + $0x160] sm:$0xff]
        %v994 = vld [vmem:[%s298 + $0x168] sm:$0xff]
        %v995 = vld [vmem:[%s298 + $0x170] sm:$0xff]
        %v996 = vld [vmem:[%s298 + $0x178] sm:$0xff]
        %v997 = vld [vmem:[%s298 + $0x180] sm:$0xff]
        %v998 = vld [vmem:[%s298 + $0x188] sm:$0xff]
        %v999 = vld [vmem:[%s298 + $0x190] sm:$0xff]
        %v1000 = vld [vmem:[%s298 + $0x198] sm:$0xff]
        %v1001 = vld [vmem:[%s298 + $0x1a0] sm:$0xff]
        %v1002 = vld [vmem:[%s298 + $0x1a8] sm:$0xff]
        %v1003 = vld [vmem:[%s298 + $0x1b0] sm:$0xff]
        %v1004 = vld [vmem:[%s298 + $0x1b8] sm:$0xff]
        %v1005 = vld [vmem:[%s298 + $0x1c0] sm:$0xff]
        %v1006 = vld [vmem:[%s298 + $0x1c8] sm:$0xff]
        %v1007 = vld [vmem:[%s298 + $0x1d0] sm:$0xff]
        %v1008 = vld [vmem:[%s298 + $0x1d8] sm:$0xff]
        %v1009 = vld [vmem:[%s298 + $0x1e0] sm:$0xff]
        %v1010 = vld [vmem:[%s298 + $0x1e8] sm:$0xff]
        %v1011 = vld [vmem:[%s298 + $0x1f0] sm:$0xff]
        %v1012 = vld [vmem:[%s298 + $0x1f8] sm:$0xff]
        %v1077 = vunpack.c.l.b16 %v949
        %v1078 = vunpack.c.h.b16 %v949
        %v1079 = vunpack.c.l.b16 %v950
        %v1080 = vunpack.c.h.b16 %v950
        %v1081 = vunpack.c.l.b16 %v951
        %v1082 = vunpack.c.h.b16 %v951
        %v1083 = vunpack.c.l.b16 %v952
        %v1084 = vunpack.c.h.b16 %v952
        %v1085 = vunpack.c.l.b16 %v953
        %v1086 = vunpack.c.h.b16 %v953
        %v1087 = vunpack.c.l.b16 %v954
        %v1088 = vunpack.c.h.b16 %v954
        %v1089 = vunpack.c.l.b16 %v955
        %v1090 = vunpack.c.h.b16 %v955
        %v1091 = vunpack.c.l.b16 %v956
        %v1092 = vunpack.c.h.b16 %v956
        %v1093 = vunpack.c.l.b16 %v957
        %v1094 = vunpack.c.h.b16 %v957
        %v1095 = vunpack.c.l.b16 %v958
        %v1096 = vunpack.c.h.b16 %v958
        %v1097 = vunpack.c.l.b16 %v959
        %v1098 = vunpack.c.h.b16 %v959
        %v1099 = vunpack.c.l.b16 %v960
        %v1100 = vunpack.c.h.b16 %v960
        %v1101 = vunpack.c.l.b16 %v961
        %v1102 = vunpack.c.h.b16 %v961
        %v1103 = vunpack.c.l.b16 %v962
        %v1104 = vunpack.c.h.b16 %v962
        %v1105 = vunpack.c.l.b16 %v963
        %v1106 = vunpack.c.h.b16 %v963
        %v1107 = vunpack.c.l.b16 %v964
        %v1108 = vunpack.c.h.b16 %v964
        %v1109 = vunpack.c.l.b16 %v965
        %v1110 = vunpack.c.h.b16 %v965
        %v1111 = vunpack.c.l.b16 %v966
        %v1112 = vunpack.c.h.b16 %v966
        %v1113 = vunpack.c.l.b16 %v967
        %v1114 = vunpack.c.h.b16 %v967
        %v1115 = vunpack.c.l.b16 %v968
        %v1116 = vunpack.c.h.b16 %v968
        %v1117 = vunpack.c.l.b16 %v969
        %v1118 = vunpack.c.h.b16 %v969
        %v1119 = vunpack.c.l.b16 %v970
        %v1120 = vunpack.c.h.b16 %v970
        %v1121 = vunpack.c.l.b16 %v971
        %v1122 = vunpack.c.h.b16 %v971
        %v1123 = vunpack.c.l.b16 %v972
        %v1124 = vunpack.c.h.b16 %v972
        %v1125 = vunpack.c.l.b16 %v973
        %v1126 = vunpack.c.h.b16 %v973
        %v1127 = vunpack.c.l.b16 %v974
        %v1128 = vunpack.c.h.b16 %v974
        %v1129 = vunpack.c.l.b16 %v975
        %v1130 = vunpack.c.h.b16 %v975
        %v1131 = vunpack.c.l.b16 %v976
        %v1132 = vunpack.c.h.b16 %v976
        %v1133 = vunpack.c.l.b16 %v977
        %v1134 = vunpack.c.h.b16 %v977
        %v1135 = vunpack.c.l.b16 %v978
        %v1136 = vunpack.c.h.b16 %v978
        %v1137 = vunpack.c.l.b16 %v979
        %v1138 = vunpack.c.h.b16 %v979
        %v1139 = vunpack.c.l.b16 %v980
        %v1140 = vunpack.c.h.b16 %v980
        %v1141 = vunpack.c.l.b16 %v981
        %v1142 = vunpack.c.h.b16 %v981
        %v1143 = vunpack.c.l.b16 %v982
        %v1144 = vunpack.c.h.b16 %v982
        %v1145 = vunpack.c.l.b16 %v983
        %v1146 = vunpack.c.h.b16 %v983
        %v1147 = vunpack.c.l.b16 %v984
        %v1148 = vunpack.c.h.b16 %v984
        %v1149 = vunpack.c.l.b16 %v985
        %v1150 = vunpack.c.h.b16 %v985
        %v1151 = vunpack.c.l.b16 %v986
        %v1152 = vunpack.c.h.b16 %v986
        %v1153 = vunpack.c.l.b16 %v987
        %v1154 = vunpack.c.h.b16 %v987
        %v1155 = vunpack.c.l.b16 %v988
        %v1156 = vunpack.c.h.b16 %v988
        %v1157 = vunpack.c.l.b16 %v989
        %v1158 = vunpack.c.h.b16 %v989
        %v1159 = vunpack.c.l.b16 %v990
        %v1160 = vunpack.c.h.b16 %v990
        %v1161 = vunpack.c.l.b16 %v991
        %v1162 = vunpack.c.h.b16 %v991
        %v1163 = vunpack.c.l.b16 %v992
        %v1164 = vunpack.c.h.b16 %v992
        %v1165 = vunpack.c.l.b16 %v993
        %v1166 = vunpack.c.h.b16 %v993
        %v1167 = vunpack.c.l.b16 %v994
        %v1168 = vunpack.c.h.b16 %v994
        %v1169 = vunpack.c.l.b16 %v995
        %v1170 = vunpack.c.h.b16 %v995
        %v1171 = vunpack.c.l.b16 %v996
        %v1172 = vunpack.c.h.b16 %v996
        %v1173 = vunpack.c.l.b16 %v997
        %v1174 = vunpack.c.h.b16 %v997
        %v1175 = vunpack.c.l.b16 %v998
        %v1176 = vunpack.c.h.b16 %v998
        %v1177 = vunpack.c.l.b16 %v999
        %v1178 = vunpack.c.h.b16 %v999
        %v1179 = vunpack.c.l.b16 %v1000
        %v1180 = vunpack.c.h.b16 %v1000
        %v1181 = vunpack.c.l.b16 %v1001
        %v1182 = vunpack.c.h.b16 %v1001
        %v1183 = vunpack.c.l.b16 %v1002
        %v1184 = vunpack.c.h.b16 %v1002
        %v1185 = vunpack.c.l.b16 %v1003
        %v1186 = vunpack.c.h.b16 %v1003
        %v1187 = vunpack.c.l.b16 %v1004
        %v1188 = vunpack.c.h.b16 %v1004
        %v1189 = vunpack.c.l.b16 %v1005
        %v1190 = vunpack.c.h.b16 %v1005
        %v1191 = vunpack.c.l.b16 %v1006
        %v1192 = vunpack.c.h.b16 %v1006
        %v1193 = vunpack.c.l.b16 %v1007
        %v1194 = vunpack.c.h.b16 %v1007
        %v1195 = vunpack.c.l.b16 %v1008
        %v1196 = vunpack.c.h.b16 %v1008
        %v1197 = vunpack.c.l.b16 %v1009
        %v1198 = vunpack.c.h.b16 %v1009
        %v1199 = vunpack.c.l.b16 %v1010
        %v1200 = vunpack.c.h.b16 %v1010
        %v1201 = vunpack.c.l.b16 %v1011
        %v1202 = vunpack.c.h.b16 %v1011
        %v1203 = vunpack.c.l.b16 %v1012
        %v1204 = vunpack.c.h.b16 %v1012
        %v1205 = vpack.c.b16 %v1081, %v1077
        %v1206 = vpack.c.b16 %v1082, %v1078
        %v1207 = vpack.c.b16 %v1083, %v1079
        %v1208 = vpack.c.b16 %v1084, %v1080
        %v1209 = vpack.c.b16 %v1089, %v1085
        %v1210 = vpack.c.b16 %v1090, %v1086
        %v1211 = vpack.c.b16 %v1091, %v1087
        %v1212 = vpack.c.b16 %v1092, %v1088
        %v1213 = vpack.c.b16 %v1097, %v1093
        %v1214 = vpack.c.b16 %v1098, %v1094
        %v1215 = vpack.c.b16 %v1099, %v1095
        %v1216 = vpack.c.b16 %v1100, %v1096
        %v1217 = vpack.c.b16 %v1105, %v1101
        %v1218 = vpack.c.b16 %v1106, %v1102
        %v1219 = vpack.c.b16 %v1107, %v1103
        %v1220 = vpack.c.b16 %v1108, %v1104
        %v1221 = vpack.c.b16 %v1113, %v1109
        %v1222 = vpack.c.b16 %v1114, %v1110
        %v1223 = vpack.c.b16 %v1115, %v1111
        %v1224 = vpack.c.b16 %v1116, %v1112
        %v1225 = vpack.c.b16 %v1121, %v1117
        %v1226 = vpack.c.b16 %v1122, %v1118
        %v1227 = vpack.c.b16 %v1123, %v1119
        %v1228 = vpack.c.b16 %v1124, %v1120
        %v1229 = vpack.c.b16 %v1129, %v1125
        %v1230 = vpack.c.b16 %v1130, %v1126
        %v1231 = vpack.c.b16 %v1131, %v1127
        %v1232 = vpack.c.b16 %v1132, %v1128
        %v1233 = vpack.c.b16 %v1137, %v1133
        %v1234 = vpack.c.b16 %v1138, %v1134
        %v1235 = vpack.c.b16 %v1139, %v1135
        %v1236 = vpack.c.b16 %v1140, %v1136
        %v1237 = vpack.c.b16 %v1145, %v1141
        %v1238 = vpack.c.b16 %v1146, %v1142
        %v1239 = vpack.c.b16 %v1147, %v1143
        %v1240 = vpack.c.b16 %v1148, %v1144
        %v1241 = vpack.c.b16 %v1153, %v1149
        %v1242 = vpack.c.b16 %v1154, %v1150
        %v1243 = vpack.c.b16 %v1155, %v1151
        %v1244 = vpack.c.b16 %v1156, %v1152
        %v1245 = vpack.c.b16 %v1161, %v1157
        %v1246 = vpack.c.b16 %v1162, %v1158
        %v1247 = vpack.c.b16 %v1163, %v1159
        %v1248 = vpack.c.b16 %v1164, %v1160
        %v1249 = vpack.c.b16 %v1169, %v1165
        %v1250 = vpack.c.b16 %v1170, %v1166
        %v1251 = vpack.c.b16 %v1171, %v1167
        %v1252 = vpack.c.b16 %v1172, %v1168
        %v1253 = vpack.c.b16 %v1177, %v1173
        %v1254 = vpack.c.b16 %v1178, %v1174
        %v1255 = vpack.c.b16 %v1179, %v1175
        %v1256 = vpack.c.b16 %v1180, %v1176
        %v1257 = vpack.c.b16 %v1185, %v1181
        %v1258 = vpack.c.b16 %v1186, %v1182
        %v1259 = vpack.c.b16 %v1187, %v1183
        %v1260 = vpack.c.b16 %v1188, %v1184
        %v1261 = vpack.c.b16 %v1193, %v1189
        %v1262 = vpack.c.b16 %v1194, %v1190
        %v1263 = vpack.c.b16 %v1195, %v1191
        %v1264 = vpack.c.b16 %v1196, %v1192
        %v1265 = vpack.c.b16 %v1201, %v1197
        %v1266 = vpack.c.b16 %v1202, %v1198
        %v1267 = vpack.c.b16 %v1203, %v1199
        %v1268 = vpack.c.b16 %v1204, %v1200
        %1333 = vmatprep.subr.bf16.mxu0 %v1206
        %1334 = vmatpush1.bf16.msra.mxu0 %v1205
        %1335 = vmatprep.subr.bf16.mxu0 %v1210
        %1336 = vmatpush1.bf16.msra.mxu0 %v1209
        %1337 = vmatprep.subr.bf16.mxu0 %v1214
        %1338 = vmatpush1.bf16.msra.mxu0 %v1213
        %1339 = vmatprep.subr.bf16.mxu0 %v1218
        %1340 = vmatpush1.bf16.msra.mxu0 %v1217
        %1341 = vmatprep.subr.bf16.mxu0 %v1222
        %1342 = vmatpush1.bf16.msra.mxu0 %v1221
        %1343 = vmatprep.subr.bf16.mxu0 %v1226
        %1344 = vmatpush1.bf16.msra.mxu0 %v1225
        %1345 = vmatprep.subr.bf16.mxu0 %v1230
        %1346 = vmatpush1.bf16.msra.mxu0 %v1229
        %1347 = vmatprep.subr.bf16.mxu0 %v1234
        %1348 = vmatpush1.bf16.msra.mxu0 %v1233
        %1349 = vmatprep.subr.bf16.mxu0 %v1238
        %1350 = vmatpush1.bf16.msra.mxu0 %v1237
        %1351 = vmatprep.subr.bf16.mxu0 %v1242
        %1352 = vmatpush1.bf16.msra.mxu0 %v1241
        %1353 = vmatprep.subr.bf16.mxu0 %v1246
        %1354 = vmatpush1.bf16.msra.mxu0 %v1245
        %1355 = vmatprep.subr.bf16.mxu0 %v1250
        %1356 = vmatpush1.bf16.msra.mxu0 %v1249
        %1357 = vmatprep.subr.bf16.mxu0 %v1254
        %1358 = vmatpush1.bf16.msra.mxu0 %v1253
        %1359 = vmatprep.subr.bf16.mxu0 %v1258
        %1360 = vmatpush1.bf16.msra.mxu0 %v1257
        %1361 = vmatprep.subr.bf16.mxu0 %v1262
        %1362 = vmatpush1.bf16.msra.mxu0 %v1261
        %1363 = vmatprep.subr.bf16.mxu0 %v1266
        %1364 = vmatpush1.bf16.msra.mxu0 %v1265
        %1365 = vmatprep.mubr.bf16.mxu0 %v948
        %1366 = vmatmul.mubr.bf16.gmra.mrb[0].mxu0 %v947
        %v1367 = vpop.f32.mrb[0].mxu0
        %v1368 = vadd.f32 0.0, %v1367
        %v1369 = vpop.f32.mrb[0].mxu0
        %v1370 = vadd.f32 0.0, %v1369
        %v1371 = vpop.f32.mrb[0].mxu0
        %v1372 = vadd.f32 0.0, %v1371
        %v1373 = vpop.f32.mrb[0].mxu0
        %v1374 = vadd.f32 0.0, %v1373
        %1375 = vdwg.mxu0
        %1376 = vmatprep.subr.bf16.mxu0 %v1208
        %1377 = vmatpush1.bf16.msra.mxu0 %v1207
        %1378 = vmatprep.subr.bf16.mxu0 %v1212
        %1379 = vmatpush1.bf16.msra.mxu0 %v1211
        %1380 = vmatprep.subr.bf16.mxu0 %v1216
        %1381 = vmatpush1.bf16.msra.mxu0 %v1215
        %1382 = vmatprep.subr.bf16.mxu0 %v1220
        %1383 = vmatpush1.bf16.msra.mxu0 %v1219
        %1384 = vmatprep.subr.bf16.mxu0 %v1224
        %1385 = vmatpush1.bf16.msra.mxu0 %v1223
        %1386 = vmatprep.subr.bf16.mxu0 %v1228
        %1387 = vmatpush1.bf16.msra.mxu0 %v1227
        %1388 = vmatprep.subr.bf16.mxu0 %v1232
        %1389 = vmatpush1.bf16.msra.mxu0 %v1231
        %1390 = vmatprep.subr.bf16.mxu0 %v1236
        %1391 = vmatpush1.bf16.msra.mxu0 %v1235
        %1392 = vmatprep.subr.bf16.mxu0 %v1240
        %1393 = vmatpush1.bf16.msra.mxu0 %v1239
        %1394 = vmatprep.subr.bf16.mxu0 %v1244
        %1395 = vmatpush1.bf16.msra.mxu0 %v1243
        %1396 = vmatprep.subr.bf16.mxu0 %v1248
        %1397 = vmatpush1.bf16.msra.mxu0 %v1247
        %1398 = vmatprep.subr.bf16.mxu0 %v1252
        %1399 = vmatpush1.bf16.msra.mxu0 %v1251
        %1400 = vmatprep.subr.bf16.mxu0 %v1256
        %1401 = vmatpush1.bf16.msra.mxu0 %v1255
        %1402 = vmatprep.subr.bf16.mxu0 %v1260
        %1403 = vmatpush1.bf16.msra.mxu0 %v1259
        %1404 = vmatprep.subr.bf16.mxu0 %v1264
        %1405 = vmatpush1.bf16.msra.mxu0 %v1263
        %1406 = vmatprep.subr.bf16.mxu0 %v1268
        %1407 = vmatpush1.bf16.msra.mxu0 %v1267
        %1408 = vmatprep.mubr.bf16.mxu0 %v948
        %1409 = vmatmul.mubr.bf16.gmra.mrb[0].mxu0 %v947
        %v1410 = vpop.f32.mrb[0].mxu0
        %v1411 = vadd.f32 0.0, %v1410
        %v1412 = vpop.f32.mrb[0].mxu0
        %v1413 = vadd.f32 0.0, %v1412
        %v1414 = vpop.f32.mrb[0].mxu0
        %v1415 = vadd.f32 0.0, %v1414
        %v1416 = vpop.f32.mrb[0].mxu0
        %v1417 = vadd.f32 0.0, %v1416
        %1418 = vdwg.mxu0
        // Predicated region
        $region65: #{residual_layer.1} parent=39 // pred_check
          %p1419 = pneg %p336
        $region66: #{residual_layer.1} parent=39 // pred_check_branch
          %1421 = sbr.rel (%p1419) target = $region68
        $region67: #{residual_layer.1} parent=39 // pred_region
          %1422 = vst [vmem:[#allocation12] sm:$0xff] %v1368
          %1423 = vst [vmem:[#allocation12 + $0x8] sm:$0xff] %v1370
          %1424 = vst [vmem:[#allocation12 + $0x10] sm:$0xff] %v1411
          %1425 = vst [vmem:[#allocation12 + $0x18] sm:$0xff] %v1413
          %1426 = vst [vmem:[#allocation12 + $0x20] sm:$0xff] %v1372
          %1427 = vst [vmem:[#allocation12 + $0x28] sm:$0xff] %v1374
          %1428 = vst [vmem:[#allocation12 + $0x30] sm:$0xff] %v1415
          %1429 = vst [vmem:[#allocation12 + $0x38] sm:$0xff] %v1417
        $region68: #{residual_layer.1} parent=39 // pred_fallthru
          _
        %p1430 = scmp.ne.s32.totalorder %s24, 0
        // Predicated region
        $region69: #{residual_layer.1} parent=39 // pred_check
          %p1431 = pneg %p1430
        $region70: #{residual_layer.1} parent=39 // pred_check_branch
          %1433 = sbr.rel (%p1431) target = $region72
        $region71: #{residual_layer.1} parent=39 // pred_region
          %v1434 = vld [vmem:[#allocation12] sm:$0xff]
          %v1435 = vld [vmem:[#allocation12 + $0x8] sm:$0xff]
          %v1436 = vld [vmem:[#allocation12 + $0x10] sm:$0xff]
          %v1437 = vld [vmem:[#allocation12 + $0x18] sm:$0xff]
          %v1438 = vld [vmem:[#allocation12 + $0x20] sm:$0xff]
          %v1439 = vld [vmem:[#allocation12 + $0x28] sm:$0xff]
          %v1440 = vld [vmem:[#allocation12 + $0x30] sm:$0xff]
          %v1441 = vld [vmem:[#allocation12 + $0x38] sm:$0xff]
          %v1442 = vadd.f32 %v1434, %v1368
          %v1443 = vadd.f32 %v1435, %v1370
          %v1444 = vadd.f32 %v1436, %v1411
          %v1445 = vadd.f32 %v1437, %v1413
          %v1446 = vadd.f32 %v1438, %v1372
          %v1447 = vadd.f32 %v1439, %v1374
          %v1448 = vadd.f32 %v1440, %v1415
          %v1449 = vadd.f32 %v1441, %v1417
          %1450 = vst [vmem:[#allocation12] sm:$0xff] %v1442
          %1451 = vst [vmem:[#allocation12 + $0x8] sm:$0xff] %v1443
          %1452 = vst [vmem:[#allocation12 + $0x10] sm:$0xff] %v1444
          %1453 = vst [vmem:[#allocation12 + $0x18] sm:$0xff] %v1445
          %1454 = vst [vmem:[#allocation12 + $0x20] sm:$0xff] %v1446
          %1455 = vst [vmem:[#allocation12 + $0x28] sm:$0xff] %v1447
          %1456 = vst [vmem:[#allocation12 + $0x30] sm:$0xff] %v1448
          %1457 = vst [vmem:[#allocation12 + $0x38] sm:$0xff] %v1449
        $region72: #{residual_layer.1} parent=39 // pred_fallthru
          _
        %p1458 = scmp.eq.s32.totalorder %s24, 1
        // Predicated region
        $region73: #{residual_layer.1} parent=39 // pred_check
          %p1459 = pneg %p1458
        $region74: #{residual_layer.1} parent=39 // pred_check_branch
          %1461 = sbr.rel (%p1459) target = $region76
        $region75: #{residual_layer.1} parent=39 // pred_region
          %v1462 = vld [vmem:[#allocation12] sm:$0xff]
          %v1463 = vld [vmem:[#allocation12 + $0x8] sm:$0xff]
          %v1464 = vld [vmem:[#allocation12 + $0x10] sm:$0xff]
          %v1465 = vld [vmem:[#allocation12 + $0x18] sm:$0xff]
          %v1466 = vld [vmem:[#allocation12 + $0x20] sm:$0xff]
          %v1467 = vld [vmem:[#allocation12 + $0x28] sm:$0xff]
          %v1468 = vld [vmem:[#allocation12 + $0x30] sm:$0xff]
          %v1469 = vld [vmem:[#allocation12 + $0x38] sm:$0xff]
          %v1470 = vadd.f32 %v1462, %v1466
          %v1471 = vrot.slane %v1470, 4
          %v1472 = vadd.f32 %v1470, %v1471
          %v1473 = vrot.slane %v1472, 2
          %v1474 = vadd.f32 %v1472, %v1473
          %v1475 = vrot.slane %v1474, 1
          %v1476 = vadd.f32 %v1474, %v1475
          %v1477 = vadd.f32 %v1463, %v1467
          %v1478 = vrot.slane %v1477, 4
          %v1479 = vadd.f32 %v1477, %v1478
          %v1480 = vrot.slane %v1479, 2
          %v1481 = vadd.f32 %v1479, %v1480
          %v1482 = vrot.slane %v1481, 1
          %v1483 = vadd.f32 %v1481, %v1482
          %v1484 = vadd.f32 %v1464, %v1468
          %v1485 = vrot.slane %v1484, 4
          %v1486 = vadd.f32 %v1484, %v1485
          %v1487 = vrot.slane %v1486, 2
          %v1488 = vadd.f32 %v1486, %v1487
          %v1489 = vrot.slane %v1488, 1
          %v1490 = vadd.f32 %v1488, %v1489
          %v1491 = vadd.f32 %v1465, %v1469
          %v1492 = vrot.slane %v1491, 4
          %v1493 = vadd.f32 %v1491, %v1492
          %v1494 = vrot.slane %v1493, 2
          %v1495 = vadd.f32 %v1493, %v1494
          %v1496 = vrot.slane %v1495, 1
          %v1497 = vadd.f32 %v1495, %v1496
          %v1498 = vmul.f32 %v1476, %v844
          %v1499 = vmul.f32 %v1483, %v844
          %v1500 = vmul.f32 %v1490, %v844
          %v1501 = vmul.f32 %v1497, %v844
          %v1502 = vsub.f32 %v1462, %v1498
          %v1503 = vsub.f32 %v1463, %v1499
          %v1504 = vsub.f32 %v1464, %v1500
          %v1505 = vsub.f32 %v1465, %v1501
          %v1506 = vsub.f32 %v1466, %v1498
          %v1507 = vsub.f32 %v1467, %v1499
          %v1508 = vsub.f32 %v1468, %v1500
          %v1509 = vsub.f32 %v1469, %v1501
          %v1510 = vmul.f32 %v1502, %v1502
          %v1511 = vmul.f32 %v1503, %v1503
          %v1512 = vmul.f32 %v1504, %v1504
          %v1513 = vmul.f32 %v1505, %v1505
          %v1514 = vmul.f32 %v1506, %v1506
          %v1515 = vmul.f32 %v1507, %v1507
          %v1516 = vmul.f32 %v1508, %v1508
          %v1517 = vmul.f32 %v1509, %v1509
          %v1518 = vadd.f32 %v1510, %v1514
          %v1519 = vrot.slane %v1518, 4
          %v1520 = vadd.f32 %v1518, %v1519
          %v1521 = vrot.slane %v1520, 2
          %v1522 = vadd.f32 %v1520, %v1521
          %v1523 = vrot.slane %v1522, 1
          %v1524 = vadd.f32 %v1522, %v1523
          %v1525 = vadd.f32 %v1511, %v1515
          %v1526 = vrot.slane %v1525, 4
          %v1527 = vadd.f32 %v1525, %v1526
          %v1528 = vrot.slane %v1527, 2
          %v1529 = vadd.f32 %v1527, %v1528
          %v1530 = vrot.slane %v1529, 1
          %v1531 = vadd.f32 %v1529, %v1530
          %v1532 = vadd.f32 %v1512, %v1516
          %v1533 = vrot.slane %v1532, 4
          %v1534 = vadd.f32 %v1532, %v1533
          %v1535 = vrot.slane %v1534, 2
          %v1536 = vadd.f32 %v1534, %v1535
          %v1537 = vrot.slane %v1536, 1
          %v1538 = vadd.f32 %v1536, %v1537
          %v1539 = vadd.f32 %v1513, %v1517
          %v1540 = vrot.slane %v1539, 4
          %v1541 = vadd.f32 %v1539, %v1540
          %v1542 = vrot.slane %v1541, 2
          %v1543 = vadd.f32 %v1541, %v1542
          %v1544 = vrot.slane %v1543, 1
          %v1545 = vadd.f32 %v1543, %v1544
          %v1546 = vmul.f32 %v1524, %v844
          %v1547 = vmul.f32 %v1531, %v844
          %v1548 = vmul.f32 %v1538, %v844
          %v1549 = vmul.f32 %v1545, %v844
          %v1550 = vld [vmem:[#allocation11] ss:$2 sm:$0xf]
          %v1551 = vadd.f32 %v1546, 1e-05
          %v1552 = vadd.f32 %v1547, 1e-05
          %v1553 = vadd.f32 %v1548, 1e-05
          %v1554 = vadd.f32 %v1549, 1e-05
          %v1555 = vrsqrt.pop %v1551
          %v1556 = vrsqrt.pop %v1552
          %v1557 = vrsqrt.pop %v1553
          %v1558 = vrsqrt.pop %v1554
          %v1563 = vcombine.low %v1555, %v1556
          %v1564 = vcombine.low %v1557, %v1558
          %v1566 = vunpack.c.l.s4 1966171168
          %v1567 = vunpack.c.0.s8 %v1566
          %v1568 = vlaneseq
          %v1569 = vshrl.u32 %v1568, 7
          %v1570 = vsub.s32 %v1567, %v1569
          %v1571 = vrot.slane %v1563, %v1570
          %v1573 = vunpack.c.l.s4 1966171168
          %v1574 = vunpack.c.0.s8 %v1573
          %v1575 = vlaneseq
          %v1576 = vshrl.u32 %v1575, 7
          %v1577 = vsub.s32 %v1574, %v1576
          %v1578 = vrot.slane %v1564, %v1577
          %v1579 = vcombine.low %v1571, %v1578
          %v1581 = vunpack.c.l.s4 1966171168
          %v1582 = vunpack.c.0.s8 %v1581
          %v1583 = vlaneseq
          %v1584 = vshrl.u32 %v1583, 7
          %v1585 = vsub.s32 %v1582, %v1584
          %v1586 = vrot.slane %v1579, %v1585
          %v1588 = vmul.f32 %v1550, %v1586
          %v1589 = vld [vmem:[#allocation3] sm:$0xff]
          %v1590 = vld [vmem:[#allocation3 + $0x8] sm:$0xff]
          %v1591 = vld [vmem:[#allocation3 + $0x10] sm:$0xff]
          %v1592 = vld [vmem:[#allocation3 + $0x18] sm:$0xff]
          %v1593 = vld [vmem:[#allocation3 + $0x20] sm:$0xff]
          %v1594 = vld [vmem:[#allocation3 + $0x28] sm:$0xff]
          %v1595 = vld [vmem:[#allocation3 + $0x30] sm:$0xff]
          %v1596 = vld [vmem:[#allocation3 + $0x38] sm:$0xff]
          %v1598 = vlaneseq
          %v1599 = vshrl.u32 %v1598, 7
          %v1600 = vsub.s32 0, %v1599
          %v1601 = vrot.slane %v1588, %v1600
          %v1602 = vlaneseq
          %v1603 = vshrl.u32 %v1602, 7
          %v1604 = vsub.s32 1, %v1603
          %v1605 = vrot.slane %v1588, %v1604
          %v1606 = vlaneseq
          %v1607 = vshrl.u32 %v1606, 7
          %v1608 = vsub.s32 2, %v1607
          %v1609 = vrot.slane %v1588, %v1608
          %v1610 = vlaneseq
          %v1611 = vshrl.u32 %v1610, 7
          %v1612 = vsub.s32 3, %v1611
          %v1613 = vrot.slane %v1588, %v1612
          %v1618 = vmul.f32 %v1502, %v1601
          %v1619 = vmul.f32 %v1503, %v1605
          %v1620 = vmul.f32 %v1504, %v1609
          %v1621 = vmul.f32 %v1505, %v1613
          %v1622 = vmul.f32 %v1506, %v1601
          %v1623 = vmul.f32 %v1507, %v1605
          %v1624 = vmul.f32 %v1508, %v1609
          %v1625 = vmul.f32 %v1509, %v1613
          %v1626 = vadd.f32 %v1589, %v1618
          %v1627 = vadd.f32 %v1590, %v1619
          %v1628 = vadd.f32 %v1591, %v1620
          %v1629 = vadd.f32 %v1592, %v1621
          %v1630 = vadd.f32 %v1593, %v1622
          %v1631 = vadd.f32 %v1594, %v1623
          %v1632 = vadd.f32 %v1595, %v1624
          %v1633 = vadd.f32 %v1596, %v1625
          %s1634 = scalar_lea.vmem [#allocation11], 1
          %v1635 = vld [vmem:[%s1634] ss:$2 sm:$0xf]
          %v1637 = vlaneseq
          %v1638 = vshrl.u32 %v1637, 7
          %v1639 = vsub.s32 0, %v1638
          %v1640 = vrot.slane %v1635, %v1639
          %v1641 = vlaneseq
          %v1642 = vshrl.u32 %v1641, 7
          %v1643 = vsub.s32 1, %v1642
          %v1644 = vrot.slane %v1635, %v1643
          %v1645 = vlaneseq
          %v1646 = vshrl.u32 %v1645, 7
          %v1647 = vsub.s32 2, %v1646
          %v1648 = vrot.slane %v1635, %v1647
          %v1649 = vlaneseq
          %v1650 = vshrl.u32 %v1649, 7
          %v1651 = vsub.s32 3, %v1650
          %v1652 = vrot.slane %v1635, %v1651
          %v1657 = vadd.f32 %v1626, %v1640
          %v1658 = vadd.f32 %v1627, %v1644
          %v1659 = vadd.f32 %v1628, %v1648
          %v1660 = vadd.f32 %v1629, %v1652
          %v1661 = vadd.f32 %v1630, %v1640
          %v1662 = vadd.f32 %v1631, %v1644
          %v1663 = vadd.f32 %v1632, %v1648
          %v1664 = vadd.f32 %v1633, %v1652
          %1665 = vst [vmem:[#allocation12] sm:$0xff] %v1657
          %1666 = vst [vmem:[#allocation12 + $0x8] sm:$0xff] %v1658
          %1667 = vst [vmem:[#allocation12 + $0x10] sm:$0xff] %v1659
          %1668 = vst [vmem:[#allocation12 + $0x18] sm:$0xff] %v1660
          %1669 = vst [vmem:[#allocation12 + $0x20] sm:$0xff] %v1661
          %1670 = vst [vmem:[#allocation12 + $0x28] sm:$0xff] %v1662
          %1671 = vst [vmem:[#allocation12 + $0x30] sm:$0xff] %v1663
          %1672 = vst [vmem:[#allocation12 + $0x38] sm:$0xff] %v1664
        $region76: #{residual_layer.1} parent=39 // pred_fallthru
          _
        // Predicated region
        $region77: #{residual_layer.1} parent=39 // pred_check
          %p1673 = pneg %p157
        $region78: #{residual_layer.1} parent=39 // pred_check_branch
          %1675 = sbr.rel (%p1673) target = $region80
        $region79: #{residual_layer.1} parent=39 // pred_region
          %s1677 = ssub.s32 1024, 1024
          %1678 = vsyncadd [#allocation5], %s1677
          %s1679 = sshll.u32 [#allocation12], 4
          %s1680 = int_to_ptr.vmem [resolvable:$true] %s1679
          %1685 = dma.vmem_to_hbm [thread:$0]  %s1680, 1024, %s5, [#allocation5], 512, 512, 32
        $region80: #{residual_layer.1} parent=39 // pred_fallthru
          _
        // Predicated region
        $region81: #{residual_layer.1} parent=39 // pred_check
          %p1686 = pneg %p157
        $region82: #{residual_layer.1} parent=39 // pred_check_branch
          %1688 = sbr.rel (%p1686) target = $region84
        $region83: #{residual_layer.1} parent=39 // pred_region
          %1689 = dma.done [#allocation5], 1024
        $region84: #{residual_layer.1} parent=39 // pred_fallthru
          _
      $region40: #{residual_layer.1} parent=5 // pred_fallthru
        _
      %p1690 = scmp.le.s32.totalorder 2, %s19
      // Predicated region
      $region85: #{residual_layer.1} parent=5 // pred_check
        %p1691 = pneg %p1690
      $region86: #{residual_layer.1} parent=5 // pred_check_branch
        %1693 = sbr.rel (%p1691) target = $region88
      $region87: #{residual_layer.1} parent=5 // pred_region
        %s1694 = ssub.s32 %s19, 2
      $region88: #{residual_layer.1} parent=5 // pred_fallthru
        _
    $region6: #{residual_layer.1} parent=1 // loop_footer
      %s23 = sadd.s32 1, %s19
    $region7: #{residual_layer.1} parent=1 // loop_footer_branch
      %18 = sbr.rel target = $region3
    $region8: #{residual_layer.1} parent=1 // loop_exit
      _
    %1695 = vsyncpa [#allocation4], 1
    %s1696 = scalar_lea.sflag [#allocation4], 1
    %1697 = vsyncpa %s1696, 1
    %1698 = vsyncpa [#allocation7], 1
    %s1699 = scalar_lea.sflag [#allocation7], 1
    %1700 = vsyncpa %s1699, 1
    %1701 = vsyncpa [#allocation10], 1
    %s1702 = scalar_lea.sflag [#allocation10], 1
    %1703 = vsyncpa %s1702, 1
    %1704 = vsyncpa [#allocation5], 1
    %s1705 = scalar_lea.sflag [#allocation5], 1
    %1706 = vsyncpa %s1705, 1

</llo_original>
